<compile_context>
chip_gen: v5e
topology: v5e:2x2
jax: 0.10.0
libtpu: 0.0.40
codegen_flags: <defaults>
</compile_context>

<pallas_src>
import math

import jax
import jax.numpy as jnp
from jax.experimental import pallas as pl
from jax.experimental.pallas import tpu as pltpu


def _round_up(x, m):
    return ((x + m - 1) // m) * m


def _pad2(x, rows, cols):
    r, c = x.shape
    return jnp.pad(x, ((0, rows - r), (0, cols - c)))


def _make_gcn_layer_kernel(activation, binarize):
    """GCNConv + activation for one row-tile of nodes.

    Grid = (row tiles, reduction tiles over A's columns). A@X is accumulated
    in an f32 VMEM scratch across the reduction axis; the small, fully
    resident weight matrix is applied once per row tile at the last step:
        out = act((A @ X) @ W + b)
    """

    def kernel(a_ref, x_ref, w_ref, b_ref, *outs):
        if binarize:
            h_ref, hbin_ref, acc_ref = outs
        else:
            (h_ref, acc_ref), hbin_ref = outs, None

        k = pl.program_id(1)

        @pl.when(k == 0)
        def _init():
            acc_ref[...] = jnp.zeros_like(acc_ref)

        # bf16 MXU inputs, f32 accumulation.
        acc_ref[...] += jnp.dot(
            a_ref[...], x_ref[...], preferred_element_type=jnp.float32
        )

        @pl.when(k == pl.num_programs(1) - 1)
        def _finalize():
            ax = acc_ref[...].astype(w_ref.dtype)  # bf16 for the MXU
            h = jnp.dot(ax, w_ref[...], preferred_element_type=jnp.float32)
            h = h + b_ref[...]  # f32 bias, f32 epilogue (v5e-friendly)
            if activation == "relu":
                h = jnp.maximum(h, 0.0)
            else:  # sigmoid: exp + approx reciprocal both on the EUP slot
                h = pl.reciprocal(1.0 + jnp.exp(-h), approx=True)
            h_ref[...] = h.astype(h_ref.dtype)
            if binarize:
                hbin_ref[...] = jnp.where(h >= 0.5, 1.0, 0.0).astype(hbin_ref.dtype)

    return kernel


def gcn_conv(a, x, w, b, *, activation, binarize=False, block_m=256, block_k=256):
    """act(A @ X @ W + b) on padded, lane-dense operands.

    a: (Np, Np) bf16     x: (Np, Fin_p) bf16
    w: (Fin_p, Fout_p) bf16     b: (1, Fout_p) f32
    Np multiple of block_m/block_k; Fin_p/Fout_p multiples of 128.
    block 256 is sized for the v6e/v7x 2x256x256 MXU; use 128 on v5e if
    desired, and halve A-tiles if VMEM-pressured on v7x (64 MiB physical).
    """
    n = a.shape[0]
    f_in = x.shape[1]
    f_out = w.shape[1]
    bm = min(block_m, n)
    bk = min(block_k, n)
    assert n % bm == 0 and n % bk == 0

    grid = (n // bm, n // bk)  # rows "parallel", reduction last ("arbitrary")

    out_shape = [jax.ShapeDtypeStruct((n, f_out), jnp.float32)]
    out_specs = [pl.BlockSpec((bm, f_out), lambda i, k: (i, 0))]
    if binarize:
        out_shape.append(jax.ShapeDtypeStruct((n, f_out), jnp.float32))
        out_specs.append(pl.BlockSpec((bm, f_out), lambda i, k: (i, 0)))

    kernel = _make_gcn_layer_kernel(activation, binarize)

    return pl.pallas_call(
        kernel,
        out_shape=tuple(out_shape),
        grid_spec=pltpu.PrefetchScalarGridSpec(
            num_scalar_prefetch=0,
            grid=grid,
            in_specs=[
                pl.BlockSpec((bm, bk), lambda i, k: (i, k)),      # A tile
                pl.BlockSpec((bk, f_in), lambda i, k: (k, 0)),    # X rows of k tile
                pl.BlockSpec((f_in, f_out), lambda i, k: (0, 0)),  # W (resident)
                pl.BlockSpec((1, f_out), lambda i, k: (0, 0)),     # bias (f32)
            ],
            out_specs=tuple(out_specs),
            scratch_shapes=[pltpu.VMEM((bm, f_in), jnp.float32)],  # A@X accum
        ),
        compiler_params=pltpu.CompilerParams(
            dimension_semantics=("parallel", "arbitrary"),
            vmem_limit_bytes=32 * 1024 * 1024,
        ),
    )(a, x, w, b)


def gcn_forward(a_norm, x, w1, b1, w2, b2, *, block=256):
    """Full GCN forward: relu(conv1) -> sigmoid(conv2) -> (h, binarized h)."""
    n, f_in = x.shape
    f_mid = w1.shape[1]
    f_out = w2.shape[1]

    n_p = _round_up(n, block)
    f_in_p = _round_up(f_in, 128)
    f_mid_p = _round_up(f_mid, 128)
    f_out_p = _round_up(f_out, 128)

    # bf16 MXU operands, f32 biases.  Zero padding is exact for the real
    # rows/columns (padded A rows/cols and W rows/cols are zero).
    a_p = _pad2(a_norm, n_p, n_p).astype(jnp.bfloat16)
    x_p = _pad2(x, n_p, f_in_p).astype(jnp.bfloat16)
    w1_p = _pad2(w1, f_in_p, f_mid_p).astype(jnp.bfloat16)
    b1_p = _pad2(b1, 1, f_mid_p).astype(jnp.float32)
    w2_p = _pad2(w2, f_mid_p, f_out_p).astype(jnp.bfloat16)
    b2_p = _pad2(b2, 1, f_out_p).astype(jnp.float32)

    # Layer 1: relu(A @ X @ W1 + b1)
    (h1,) = gcn_conv(a_p, x_p, w1_p, b1_p, activation="relu",
                     block_m=block, block_k=block)
    # Layer 2: sigmoid(A @ H1 @ W2 + b2) + in-kernel 0.5 threshold.
    h2, h2_bin = gcn_conv(a_p, h1.astype(jnp.bfloat16), w2_p, b2_p,
                          activation="sigmoid", binarize=True,
                          block_m=block, block_k=block)
    return h2[:n, :f_out], h2_bin[:n, :f_out]


def build_norm_adj(edge_index, num_nodes):
    """D^{-1/2} (A + I) D^{-1/2}, PyG gcn_norm convention (src=row0, dst=row1)."""
    src = edge_index[0]
    dst = edge_index[1]
    a = jnp.zeros((num_nodes, num_nodes), jnp.float32)
    a = a.at[dst, src].add(1.0)  # message flows src -> dst
    a = a + jnp.eye(num_nodes, dtype=jnp.float32)
    deg = a.sum(axis=1)
    dinv = 1.0 / jnp.sqrt(deg)
    return a * dinv[:, None] * dinv[None, :]


def glorot(key, fan_in, fan_out):
    bound = math.sqrt(6.0 / (fan_in + fan_out))
    return jax.random.uniform(key, (fan_in, fan_out), jnp.float32, -bound, bound)


if __name__ == "__main__":
    N = 16
    IN_FEATS = 8
    H_FEATS = 4
    # hidden_feats = floor((h_feats + in_feats)/2) is computed in __init__ but
    # unused by the module's forward: conv1 is (in,in), conv2 is (in,h).

    key = jax.random.PRNGKey(0)
    kx, kw1, kw2 = jax.random.split(key, 3)

    # node features
    x = jax.random.normal(kx, (N, IN_FEATS), jnp.float32)

    # deterministic small graph: ring edges in both directions
    src = jnp.arange(N, dtype=jnp.int32)
    dst = (src + 1) % N
    edge_index = jnp.stack(
        [jnp.concatenate([src, dst]), jnp.concatenate([dst, src])], axis=0
    )

    # parameters (PyG GCNConv: glorot weight, zero bias)
    w1 = glorot(kw1, IN_FEATS, IN_FEATS)
    b1 = jnp.zeros((1, IN_FEATS), jnp.float32)
    w2 = glorot(kw2, IN_FEATS, H_FEATS)
    b2 = jnp.zeros((1, H_FEATS), jnp.float32)

    a_norm = build_norm_adj(edge_index, N)

    h, h_bin = jax.jit(gcn_forward)(a_norm, x, w1, b1, w2, b2)
    jax.block_until_ready((h, h_bin))

    # sanity: f32 reference (kernel uses bf16 MXU inputs with f32 accumulation,
    # so compare with a bf16-scale tolerance; threshold checked self-consistently).
    h1_ref = jnp.maximum(a_norm @ (x @ w1) + b1, 0.0)
    h2_ref = jax.nn.sigmoid(a_norm @ (h1_ref @ w2) + b2)
    assert h.shape == (N, H_FEATS) and h_bin.shape == (N, H_FEATS)
    assert jnp.allclose(h, h2_ref, atol=3e-2), "h mismatch vs f32 reference"
    assert jnp.array_equal(h_bin, jnp.where(h >= 0.5, 1.0, 0.0)), "h_clone mismatch"

    print("KERNEL_OK")
</pallas_src>

<mosaic_0001>
module attributes {stable_mosaic.version = 11 : i64} {
  func.func @kernel(%arg0: i32, %arg1: i32, %arg2: memref<256x256xbf16, #tpu.memory_space<vmem>>, %arg3: memref<256x128xbf16, #tpu.memory_space<vmem>>, %arg4: memref<128x128xbf16, #tpu.memory_space<vmem>>, %arg5: memref<1x128xf32, #tpu.memory_space<vmem>>, %arg6: memref<256x128xf32, #tpu.memory_space<vmem>>, %arg7: memref<256x128xf32, #tpu.memory_space<vmem>>) attributes {dimension_semantics = [#tpu.dimension_semantics<parallel>, #tpu.dimension_semantics<arbitrary>], iteration_bounds = array<i64: 1, 1>, scalar_prefetch = 0 : i64, scratch_operands = 1 : i64, tpu.core_type = #tpu.core_type<tc>, window_params = [{transform_indices = @transform_0, window_bounds = array<i64: 256, 256>}, {transform_indices = @transform_1, window_bounds = array<i64: 256, 128>}, {pipeline_mode = #tpu.pipeline_mode<synchronous>, transform_indices = @transform_2, window_bounds = array<i64: 128, 128>}, {pipeline_mode = #tpu.pipeline_mode<synchronous>, transform_indices = @transform_3, window_bounds = array<i64: 1, 128>}, {transform_indices = @transform_4, window_bounds = array<i64: 256, 128>}]} {
    %c0_i32 = arith.constant 0 : i32
    %0 = arith.cmpi eq, %arg1, %c0_i32 : i32
    %1 = arith.extui %0 : i1 to i32
    %c0_i32_0 = arith.constant 0 : i32
    %2 = arith.cmpi ne, %1, %c0_i32_0 : i32
    scf.if %2 {
      %cst_10 = arith.constant 0.000000e+00 : f32
      %12 = vector.broadcast %cst_10 : f32 to vector<256x128xf32>
      %c0_11 = arith.constant 0 : index
      %c0_12 = arith.constant 0 : index
      %13 = vector.load %arg7[%c0_11, %c0_12] : memref<256x128xf32, #tpu.memory_space<vmem>>, vector<256x128xf32>
      tpu.vector_store %arg7[%c0_11, %c0_12], %12 {strides = array<i32>} : memref<256x128xf32, #tpu.memory_space<vmem>>, vector<256x128xf32>,
    } else {
    }
    %c0 = arith.constant 0 : index
    %c0_1 = arith.constant 0 : index
    %3 = vector.load %arg7[%c0, %c0_1] : memref<256x128xf32, #tpu.memory_space<vmem>>, vector<256x128xf32>
    %c0_2 = arith.constant 0 : index
    %c0_3 = arith.constant 0 : index
    %4 = vector.load %arg2[%c0_2, %c0_3] : memref<256x256xbf16, #tpu.memory_space<vmem>>, vector<256x256xbf16>
    %c0_4 = arith.constant 0 : index
    %c0_5 = arith.constant 0 : index
    %5 = vector.load %arg3[%c0_4, %c0_5] : memref<256x128xbf16, #tpu.memory_space<vmem>>, vector<256x128xbf16>
    %cst = arith.constant dense<0.000000e+00> : vector<256x128xf32>
    %6 = tpu.matmul %4, %5, %cst {dimension_numbers = #tpu.dot_dimension_numbers<[1], [0], [0], [1], [0, 0, 1, 1], [], []>} : vector<256x256xbf16>, vector<256x128xbf16>, vector<256x128xf32> -> vector<256x128xf32>
    %7 = arith.addf %3, %6 : vector<256x128xf32>
    %c0_6 = arith.constant 0 : index
    %c0_7 = arith.constant 0 : index
    %8 = vector.load %arg7[%c0_6, %c0_7] : memref<256x128xf32, #tpu.memory_space<vmem>>, vector<256x128xf32>
    tpu.vector_store %arg7[%c0_6, %c0_7], %7 {strides = array<i32>} : memref<256x128xf32, #tpu.memory_space<vmem>>, vector<256x128xf32>,
    %c0_i32_8 = arith.constant 0 : i32
    %9 = arith.cmpi eq, %arg1, %c0_i32_8 : i32
    %10 = arith.extui %9 : i1 to i32
    %c0_i32_9 = arith.constant 0 : i32
    %11 = arith.cmpi ne, %10, %c0_i32_9 : i32
    scf.if %11 {
      %c0_10 = arith.constant 0 : index
      %c0_11 = arith.constant 0 : index
      %12 = vector.load %arg7[%c0_10, %c0_11] : memref<256x128xf32, #tpu.memory_space<vmem>>, vector<256x128xf32>
      %13 = arith.truncf %12 : vector<256x128xf32> to vector<256x128xbf16>
      %c0_12 = arith.constant 0 : index
      %c0_13 = arith.constant 0 : index
      %14 = vector.load %arg4[%c0_12, %c0_13] : memref<128x128xbf16, #tpu.memory_space<vmem>>, vector<128x128xbf16>
      %cst_14 = arith.constant dense<0.000000e+00> : vector<256x128xf32>
      %15 = tpu.matmul %13, %14, %cst_14 {dimension_numbers = #tpu.dot_dimension_numbers<[1], [0], [0], [1], [0, 0, 1, 1], [], []>} : vector<256x128xbf16>, vector<128x128xbf16>, vector<256x128xf32> -> vector<256x128xf32>
      %c0_15 = arith.constant 0 : index
      %c0_16 = arith.constant 0 : index
      %16 = vector.load %arg5[%c0_15, %c0_16] : memref<1x128xf32, #tpu.memory_space<vmem>>, vector<1x128xf32>
      %17 = vector.broadcast %16 : vector<1x128xf32> to vector<256x128xf32>
      %18 = arith.addf %15, %17 : vector<256x128xf32>
      %cst_17 = arith.constant 0.000000e+00 : f32
      %19 = vector.broadcast %cst_17 : f32 to vector<256x128xf32>
      %20 = arith.maximumf %18, %19 : vector<256x128xf32>
      %c0_18 = arith.constant 0 : index
      %c0_19 = arith.constant 0 : index
      %21 = vector.load %arg6[%c0_18, %c0_19] : memref<256x128xf32, #tpu.memory_space<vmem>>, vector<256x128xf32>
      tpu.vector_store %arg6[%c0_18, %c0_19], %20 {strides = array<i32>} : memref<256x128xf32, #tpu.memory_space<vmem>>, vector<256x128xf32>,
    } else {
    }
    return
  }
  func.func @transform_0(%arg0: i32, %arg1: i32) -> (i32, i32) {
    %c0_i32 = arith.constant 0 : i32
    return %arg0, %arg1 : i32, i32
  }
  func.func @transform_1(%arg0: i32, %arg1: i32) -> (i32, i32) {
    %c0_i32 = arith.constant 0 : i32
    %c0_i32_0 = arith.constant 0 : i32
    return %arg1, %c0_i32 : i32, i32
  }
  func.func @transform_2(%arg0: i32, %arg1: i32) -> (i32, i32) {
    %c0_i32 = arith.constant 0 : i32
    %c0_i32_0 = arith.constant 0 : i32
    %c0_i32_1 = arith.constant 0 : i32
    return %c0_i32, %c0_i32_0 : i32, i32
  }
  func.func @transform_3(%arg0: i32, %arg1: i32) -> (i32, i32) {
    %c0_i32 = arith.constant 0 : i32
    %c0_i32_0 = arith.constant 0 : i32
    %c0_i32_1 = arith.constant 0 : i32
    return %c0_i32, %c0_i32_0 : i32, i32
  }
  func.func @transform_4(%arg0: i32, %arg1: i32) -> (i32, i32) {
    %c0_i32 = arith.constant 0 : i32
    %c0_i32_0 = arith.constant 0 : i32
    return %arg0, %c0_i32 : i32, i32
  }
}

module attributes {stable_mosaic.version = 11 : i64} {
  func.func @kernel(%arg0: i32, %arg1: i32, %arg2: memref<256x256xbf16, #tpu.memory_space<vmem>>, %arg3: memref<256x128xbf16, #tpu.memory_space<vmem>>, %arg4: memref<128x128xbf16, #tpu.memory_space<vmem>>, %arg5: memref<1x128xf32, #tpu.memory_space<vmem>>, %arg6: memref<256x128xf32, #tpu.memory_space<vmem>>, %arg7: memref<256x128xf32, #tpu.memory_space<vmem>>, %arg8: memref<256x128xf32, #tpu.memory_space<vmem>>) attributes {dimension_semantics = [#tpu.dimension_semantics<parallel>, #tpu.dimension_semantics<arbitrary>], iteration_bounds = array<i64: 1, 1>, scalar_prefetch = 0 : i64, scratch_operands = 1 : i64, tpu.core_type = #tpu.core_type<tc>, window_params = [{transform_indices = @transform_0, window_bounds = array<i64: 256, 256>}, {transform_indices = @transform_1, window_bounds = array<i64: 256, 128>}, {pipeline_mode = #tpu.pipeline_mode<synchronous>, transform_indices = @transform_2, window_bounds = array<i64: 128, 128>}, {pipeline_mode = #tpu.pipeline_mode<synchronous>, transform_indices = @transform_3, window_bounds = array<i64: 1, 128>}, {transform_indices = @transform_4, window_bounds = array<i64: 256, 128>}, {transform_indices = @transform_5, window_bounds = array<i64: 256, 128>}]} {
    %c0_i32 = arith.constant 0 : i32
    %0 = arith.cmpi eq, %arg1, %c0_i32 : i32
    %1 = arith.extui %0 : i1 to i32
    %c0_i32_0 = arith.constant 0 : i32
    %2 = arith.cmpi ne, %1, %c0_i32_0 : i32
    scf.if %2 {
      %cst_10 = arith.constant 0.000000e+00 : f32
      %12 = vector.broadcast %cst_10 : f32 to vector<256x128xf32>
      %c0_11 = arith.constant 0 : index
      %c0_12 = arith.constant 0 : index
      %13 = vector.load %arg8[%c0_11, %c0_12] : memref<256x128xf32, #tpu.memory_space<vmem>>, vector<256x128xf32>
      tpu.vector_store %arg8[%c0_11, %c0_12], %12 {strides = array<i32>} : memref<256x128xf32, #tpu.memory_space<vmem>>, vector<256x128xf32>,
    } else {
    }
    %c0 = arith.constant 0 : index
    %c0_1 = arith.constant 0 : index
    %3 = vector.load %arg8[%c0, %c0_1] : memref<256x128xf32, #tpu.memory_space<vmem>>, vector<256x128xf32>
    %c0_2 = arith.constant 0 : index
    %c0_3 = arith.constant 0 : index
    %4 = vector.load %arg2[%c0_2, %c0_3] : memref<256x256xbf16, #tpu.memory_space<vmem>>, vector<256x256xbf16>
    %c0_4 = arith.constant 0 : index
    %c0_5 = arith.constant 0 : index
    %5 = vector.load %arg3[%c0_4, %c0_5] : memref<256x128xbf16, #tpu.memory_space<vmem>>, vector<256x128xbf16>
    %cst = arith.constant dense<0.000000e+00> : vector<256x128xf32>
    %6 = tpu.matmul %4, %5, %cst {dimension_numbers = #tpu.dot_dimension_numbers<[1], [0], [0], [1], [0, 0, 1, 1], [], []>} : vector<256x256xbf16>, vector<256x128xbf16>, vector<256x128xf32> -> vector<256x128xf32>
    %7 = arith.addf %3, %6 : vector<256x128xf32>
    %c0_6 = arith.constant 0 : index
    %c0_7 = arith.constant 0 : index
    %8 = vector.load %arg8[%c0_6, %c0_7] : memref<256x128xf32, #tpu.memory_space<vmem>>, vector<256x128xf32>
    tpu.vector_store %arg8[%c0_6, %c0_7], %7 {strides = array<i32>} : memref<256x128xf32, #tpu.memory_space<vmem>>, vector<256x128xf32>,
    %c0_i32_8 = arith.constant 0 : i32
    %9 = arith.cmpi eq, %arg1, %c0_i32_8 : i32
    %10 = arith.extui %9 : i1 to i32
    %c0_i32_9 = arith.constant 0 : i32
    %11 = arith.cmpi ne, %10, %c0_i32_9 : i32
    scf.if %11 {
      %c0_10 = arith.constant 0 : index
      %c0_11 = arith.constant 0 : index
      %12 = vector.load %arg8[%c0_10, %c0_11] : memref<256x128xf32, #tpu.memory_space<vmem>>, vector<256x128xf32>
      %13 = arith.truncf %12 : vector<256x128xf32> to vector<256x128xbf16>
      %c0_12 = arith.constant 0 : index
      %c0_13 = arith.constant 0 : index
      %14 = vector.load %arg4[%c0_12, %c0_13] : memref<128x128xbf16, #tpu.memory_space<vmem>>, vector<128x128xbf16>
      %cst_14 = arith.constant dense<0.000000e+00> : vector<256x128xf32>
      %15 = tpu.matmul %13, %14, %cst_14 {dimension_numbers = #tpu.dot_dimension_numbers<[1], [0], [0], [1], [0, 0, 1, 1], [], []>} : vector<256x128xbf16>, vector<128x128xbf16>, vector<256x128xf32> -> vector<256x128xf32>
      %c0_15 = arith.constant 0 : index
      %c0_16 = arith.constant 0 : index
      %16 = vector.load %arg5[%c0_15, %c0_16] : memref<1x128xf32, #tpu.memory_space<vmem>>, vector<1x128xf32>
      %17 = vector.broadcast %16 : vector<1x128xf32> to vector<256x128xf32>
      %18 = arith.addf %15, %17 : vector<256x128xf32>
      %cst_17 = arith.constant 0.000000e+00 : f32
      %19 = vector.broadcast %cst_17 : f32 to vector<256x128xf32>
      %20 = arith.subf %19, %18 : vector<256x128xf32>
      %21 = math.exp %20 : vector<256x128xf32>
      %cst_18 = arith.constant 1.000000e+00 : f32
      %22 = vector.broadcast %cst_18 : f32 to vector<256x128xf32>
      %23 = arith.addf %22, %21 : vector<256x128xf32>
      %24 = tpu.reciprocal %23 {approx = true} : vector<256x128xf32> -> vector<256x128xf32>
      %c0_19 = arith.constant 0 : index
      %c0_20 = arith.constant 0 : index
      %25 = vector.load %arg6[%c0_19, %c0_20] : memref<256x128xf32, #tpu.memory_space<vmem>>, vector<256x128xf32>
      tpu.vector_store %arg6[%c0_19, %c0_20], %24 {strides = array<i32>} : memref<256x128xf32, #tpu.memory_space<vmem>>, vector<256x128xf32>,
      %cst_21 = arith.constant 5.000000e-01 : f32
      %26 = vector.broadcast %cst_21 : f32 to vector<256x128xf32>
      %27 = arith.cmpf oge, %24, %26 : vector<256x128xf32>
      %cst_22 = arith.constant 1.000000e+00 : f32
      %cst_23 = arith.constant 0.000000e+00 : f32
      %28 = vector.broadcast %cst_22 : f32 to vector<256x128xf32>
      %29 = vector.broadcast %cst_23 : f32 to vector<256x128xf32>
      %30 = arith.select %27, %28, %29 : vector<256x128xi1>, vector<256x128xf32>
      %c0_24 = arith.constant 0 : index
      %c0_25 = arith.constant 0 : index
      %31 = vector.load %arg7[%c0_24, %c0_25] : memref<256x128xf32, #tpu.memory_space<vmem>>, vector<256x128xf32>
      tpu.vector_store %arg7[%c0_24, %c0_25], %30 {strides = array<i32>} : memref<256x128xf32, #tpu.memory_space<vmem>>, vector<256x128xf32>,
    } else {
    }
    return
  }
  func.func @transform_0(%arg0: i32, %arg1: i32) -> (i32, i32) {
    %c0_i32 = arith.constant 0 : i32
    return %arg0, %arg1 : i32, i32
  }
  func.func @transform_1(%arg0: i32, %arg1: i32) -> (i32, i32) {
    %c0_i32 = arith.constant 0 : i32
    %c0_i32_0 = arith.constant 0 : i32
    return %arg1, %c0_i32 : i32, i32
  }
  func.func @transform_2(%arg0: i32, %arg1: i32) -> (i32, i32) {
    %c0_i32 = arith.constant 0 : i32
    %c0_i32_0 = arith.constant 0 : i32
    %c0_i32_1 = arith.constant 0 : i32
    return %c0_i32, %c0_i32_0 : i32, i32
  }
  func.func @transform_3(%arg0: i32, %arg1: i32) -> (i32, i32) {
    %c0_i32 = arith.constant 0 : i32
    %c0_i32_0 = arith.constant 0 : i32
    %c0_i32_1 = arith.constant 0 : i32
    return %c0_i32, %c0_i32_0 : i32, i32
  }
  func.func @transform_4(%arg0: i32, %arg1: i32) -> (i32, i32) {
    %c0_i32 = arith.constant 0 : i32
    %c0_i32_0 = arith.constant 0 : i32
    return %arg0, %c0_i32 : i32, i32
  }
  func.func @transform_5(%arg0: i32, %arg1: i32) -> (i32, i32) {
    %c0_i32 = arith.constant 0 : i32
    %c0_i32_0 = arith.constant 0 : i32
    return %arg0, %c0_i32 : i32, i32
  }
}

</mosaic_0001>

<llo_original>
// kernel: gcn_forward.3
$region0: #{gcn_forward.3}
  #allocation0 [shape = 'u32[]', space=smem, size = 0x4, offset = 0x4, fixed_abs, tag = 'smem constant byte address 0x4 - core index']
  #allocation1 [shape = 'u32[72,128]{1,0:T(1,128)}', space=vmem, size = 0x9000, scoped, tag = 'internal scratch']
  #allocation2 [shape = 'f32[256,128]{1,0:T(8,128)}', space=vmem, size = 0x20000, scoped, tag = 'scratch operand']
  %s0 = inlined_call_operand.vmem [shape: bf16[256,256], index: 0, kind: input, shape index: {}]
  %s1 = inlined_call_operand.vmem [shape: bf16[256,128], index: 1, kind: input, shape index: {}]
  %s2 = inlined_call_operand.vmem [shape: bf16[128,128], index: 2, kind: input, shape index: {}]
  %s3 = inlined_call_operand.vmem [shape: f32[1,128], index: 3, kind: input, shape index: {}]
  %s4 = inlined_call_operand.vmem [shape: f32[256,128], index: 4, kind: output, shape index: {0}]
  %s5 = inlined_call_operand.vmem [shape: f32[256,128], index: 5, kind: output, shape index: {1}]
  %6 = xla_tuple %s4, %s5
  %s7 = sld [smem:[#allocation0]]
  $region42: #{gcn_forward.3} parent=0
    _
  %s9 = ssub.s32 1, %s7
  %s10 = scalar_select 0, %s9, %s7
  // Predicated region
  $region2: #{gcn_forward.3} parent=0 // pred_check
    _
  $region3: #{gcn_forward.3} parent=0 // pred_check_branch
    %12 = sbr.rel (0) target = $region5
  $region4: #{gcn_forward.3} parent=0 // pred_region
    _
  $region5: #{gcn_forward.3} parent=0 // pred_fallthru
    _
  // Predicated region
  $region6: #{gcn_forward.3} parent=0 // pred_check
    _
  $region7: #{gcn_forward.3} parent=0 // pred_check_branch
    %14 = sbr.rel (0) target = $region9
  $region8: #{gcn_forward.3} parent=0 // pred_region
    _
  $region9: #{gcn_forward.3} parent=0 // pred_fallthru
    _
  // Predicated region
  $region10: #{gcn_forward.3} parent=0 // pred_check
    _
  $region11: #{gcn_forward.3} parent=0 // pred_check_branch
    %16 = sbr.rel (0) target = $region13
  $region12: #{gcn_forward.3} parent=0 // pred_region
    _
  $region13: #{gcn_forward.3} parent=0 // pred_fallthru
    _
  // Predicated region
  $region14: #{gcn_forward.3} parent=0 // pred_check
    _
  $region15: #{gcn_forward.3} parent=0 // pred_check_branch
    %18 = sbr.rel (0) target = $region17
  $region16: #{gcn_forward.3} parent=0 // pred_region
    _
  $region17: #{gcn_forward.3} parent=0 // pred_fallthru
    _
  %p19 = scmp.eq.s32.totalorder 0, 0
  // Predicated region
  $region18: #{gcn_forward.3} parent=0 // pred_check
    %p20 = pneg %p19
  $region19: #{gcn_forward.3} parent=0 // pred_check_branch
    %22 = sbr.rel (%p20) target = $region21
  $region20: #{gcn_forward.3} parent=0 // pred_region
    %23 = vst [vmem:[#allocation2] sm:$0xff] 0.0
    %24 = vst [vmem:[#allocation2 + $0x8] sm:$0xff] 0.0
    %25 = vst [vmem:[#allocation2 + $0x10] sm:$0xff] 0.0
    %26 = vst [vmem:[#allocation2 + $0x18] sm:$0xff] 0.0
    %27 = vst [vmem:[#allocation2 + $0x20] sm:$0xff] 0.0
    %28 = vst [vmem:[#allocation2 + $0x28] sm:$0xff] 0.0
    %29 = vst [vmem:[#allocation2 + $0x30] sm:$0xff] 0.0
    %30 = vst [vmem:[#allocation2 + $0x38] sm:$0xff] 0.0
    %31 = vst [vmem:[#allocation2 + $0x40] sm:$0xff] 0.0
    %32 = vst [vmem:[#allocation2 + $0x48] sm:$0xff] 0.0
    %33 = vst [vmem:[#allocation2 + $0x50] sm:$0xff] 0.0
    %34 = vst [vmem:[#allocation2 + $0x58] sm:$0xff] 0.0
    %35 = vst [vmem:[#allocation2 + $0x60] sm:$0xff] 0.0
    %36 = vst [vmem:[#allocation2 + $0x68] sm:$0xff] 0.0
    %37 = vst [vmem:[#allocation2 + $0x70] sm:$0xff] 0.0
    %38 = vst [vmem:[#allocation2 + $0x78] sm:$0xff] 0.0
    %39 = vst [vmem:[#allocation2 + $0x80] sm:$0xff] 0.0
    %40 = vst [vmem:[#allocation2 + $0x88] sm:$0xff] 0.0
    %41 = vst [vmem:[#allocation2 + $0x90] sm:$0xff] 0.0
    %42 = vst [vmem:[#allocation2 + $0x98] sm:$0xff] 0.0
    %43 = vst [vmem:[#allocation2 + $0xa0] sm:$0xff] 0.0
    %44 = vst [vmem:[#allocation2 + $0xa8] sm:$0xff] 0.0
    %45 = vst [vmem:[#allocation2 + $0xb0] sm:$0xff] 0.0
    %46 = vst [vmem:[#allocation2 + $0xb8] sm:$0xff] 0.0
    %47 = vst [vmem:[#allocation2 + $0xc0] sm:$0xff] 0.0
    %48 = vst [vmem:[#allocation2 + $0xc8] sm:$0xff] 0.0
    %49 = vst [vmem:[#allocation2 + $0xd0] sm:$0xff] 0.0
    %50 = vst [vmem:[#allocation2 + $0xd8] sm:$0xff] 0.0
    %51 = vst [vmem:[#allocation2 + $0xe0] sm:$0xff] 0.0
    %52 = vst [vmem:[#allocation2 + $0xe8] sm:$0xff] 0.0
    %53 = vst [vmem:[#allocation2 + $0xf0] sm:$0xff] 0.0
    %54 = vst [vmem:[#allocation2 + $0xf8] sm:$0xff] 0.0
  $region21: #{gcn_forward.3} parent=0 // pred_fallthru
    _
  %v55 = vld [vmem:[#allocation2] sm:$0xff]
  %v56 = vld [vmem:[#allocation2 + $0x8] sm:$0xff]
  %v57 = vld [vmem:[#allocation2 + $0x10] sm:$0xff]
  %v58 = vld [vmem:[#allocation2 + $0x18] sm:$0xff]
  %v59 = vld [vmem:[#allocation2 + $0x20] sm:$0xff]
  %v60 = vld [vmem:[#allocation2 + $0x28] sm:$0xff]
  %v61 = vld [vmem:[#allocation2 + $0x30] sm:$0xff]
  %v62 = vld [vmem:[#allocation2 + $0x38] sm:$0xff]
  %v63 = vld [vmem:[#allocation2 + $0x40] sm:$0xff]
  %v64 = vld [vmem:[#allocation2 + $0x48] sm:$0xff]
  %v65 = vld [vmem:[#allocation2 + $0x50] sm:$0xff]
  %v66 = vld [vmem:[#allocation2 + $0x58] sm:$0xff]
  %v67 = vld [vmem:[#allocation2 + $0x60] sm:$0xff]
  %v68 = vld [vmem:[#allocation2 + $0x68] sm:$0xff]
  %v69 = vld [vmem:[#allocation2 + $0x70] sm:$0xff]
  %v70 = vld [vmem:[#allocation2 + $0x78] sm:$0xff]
  %v71 = vld [vmem:[#allocation2 + $0x80] sm:$0xff]
  %v72 = vld [vmem:[#allocation2 + $0x88] sm:$0xff]
  %v73 = vld [vmem:[#allocation2 + $0x90] sm:$0xff]
  %v74 = vld [vmem:[#allocation2 + $0x98] sm:$0xff]
  %v75 = vld [vmem:[#allocation2 + $0xa0] sm:$0xff]
  %v76 = vld [vmem:[#allocation2 + $0xa8] sm:$0xff]
  %v77 = vld [vmem:[#allocation2 + $0xb0] sm:$0xff]
  %v78 = vld [vmem:[#allocation2 + $0xb8] sm:$0xff]
  %v79 = vld [vmem:[#allocation2 + $0xc0] sm:$0xff]
  %v80 = vld [vmem:[#allocation2 + $0xc8] sm:$0xff]
  %v81 = vld [vmem:[#allocation2 + $0xd0] sm:$0xff]
  %v82 = vld [vmem:[#allocation2 + $0xd8] sm:$0xff]
  %v83 = vld [vmem:[#allocation2 + $0xe0] sm:$0xff]
  %v84 = vld [vmem:[#allocation2 + $0xe8] sm:$0xff]
  %v85 = vld [vmem:[#allocation2 + $0xf0] sm:$0xff]
  %v86 = vld [vmem:[#allocation2 + $0xf8] sm:$0xff]
  %v87 = vld [vmem:[%s0] sm:$0xff]
  %v88 = vld [vmem:[%s0 + $0x8] sm:$0xff]
  %v89 = vld [vmem:[%s0 + $0x10] sm:$0xff]
  %v90 = vld [vmem:[%s0 + $0x18] sm:$0xff]
  %v91 = vld [vmem:[%s0 + $0x20] sm:$0xff]
  %v92 = vld [vmem:[%s0 + $0x28] sm:$0xff]
  %v93 = vld [vmem:[%s0 + $0x30] sm:$0xff]
  %v94 = vld [vmem:[%s0 + $0x38] sm:$0xff]
  %v95 = vld [vmem:[%s0 + $0x40] sm:$0xff]
  %v96 = vld [vmem:[%s0 + $0x48] sm:$0xff]
  %v97 = vld [vmem:[%s0 + $0x50] sm:$0xff]
  %v98 = vld [vmem:[%s0 + $0x58] sm:$0xff]
  %v99 = vld [vmem:[%s0 + $0x60] sm:$0xff]
  %v100 = vld [vmem:[%s0 + $0x68] sm:$0xff]
  %v101 = vld [vmem:[%s0 + $0x70] sm:$0xff]
  %v102 = vld [vmem:[%s0 + $0x78] sm:$0xff]
  %v103 = vld [vmem:[%s0 + $0x80] sm:$0xff]
  %v104 = vld [vmem:[%s0 + $0x88] sm:$0xff]
  %v105 = vld [vmem:[%s0 + $0x90] sm:$0xff]
  %v106 = vld [vmem:[%s0 + $0x98] sm:$0xff]
  %v107 = vld [vmem:[%s0 + $0xa0] sm:$0xff]
  %v108 = vld [vmem:[%s0 + $0xa8] sm:$0xff]
  %v109 = vld [vmem:[%s0 + $0xb0] sm:$0xff]
  %v110 = vld [vmem:[%s0 + $0xb8] sm:$0xff]
  %v111 = vld [vmem:[%s0 + $0xc0] sm:$0xff]
  %v112 = vld [vmem:[%s0 + $0xc8] sm:$0xff]
  %v113 = vld [vmem:[%s0 + $0xd0] sm:$0xff]
  %v114 = vld [vmem:[%s0 + $0xd8] sm:$0xff]
  %v115 = vld [vmem:[%s0 + $0xe0] sm:$0xff]
  %v116 = vld [vmem:[%s0 + $0xe8] sm:$0xff]
  %v117 = vld [vmem:[%s0 + $0xf0] sm:$0xff]
  %v118 = vld [vmem:[%s0 + $0xf8] sm:$0xff]
  %v119 = vld [vmem:[%s1] sm:$0xf]
  %v120 = vld [vmem:[%s1 + $0x4] sm:$0xf]
  %v121 = vld [vmem:[%s1 + $0x8] sm:$0xf]
  %v122 = vld [vmem:[%s1 + $0xc] sm:$0xf]
  %v123 = vld [vmem:[%s1 + $0x10] sm:$0xf]
  %v124 = vld [vmem:[%s1 + $0x14] sm:$0xf]
  %v125 = vld [vmem:[%s1 + $0x18] sm:$0xf]
  %v126 = vld [vmem:[%s1 + $0x1c] sm:$0xf]
  %v127 = vld [vmem:[%s1 + $0x20] sm:$0xf]
  %v128 = vld [vmem:[%s1 + $0x24] sm:$0xf]
  %v129 = vld [vmem:[%s1 + $0x28] sm:$0xf]
  %v130 = vld [vmem:[%s1 + $0x2c] sm:$0xf]
  %v131 = vld [vmem:[%s1 + $0x30] sm:$0xf]
  %v132 = vld [vmem:[%s1 + $0x34] sm:$0xf]
  %v133 = vld [vmem:[%s1 + $0x38] sm:$0xf]
  %v134 = vld [vmem:[%s1 + $0x3c] sm:$0xf]
  %v135 = vld [vmem:[%s1 + $0x40] sm:$0xf]
  %v136 = vld [vmem:[%s1 + $0x44] sm:$0xf]
  %v137 = vld [vmem:[%s1 + $0x48] sm:$0xf]
  %v138 = vld [vmem:[%s1 + $0x4c] sm:$0xf]
  %v139 = vld [vmem:[%s1 + $0x50] sm:$0xf]
  %v140 = vld [vmem:[%s1 + $0x54] sm:$0xf]
  %v141 = vld [vmem:[%s1 + $0x58] sm:$0xf]
  %v142 = vld [vmem:[%s1 + $0x5c] sm:$0xf]
  %v143 = vld [vmem:[%s1 + $0x60] sm:$0xf]
  %v144 = vld [vmem:[%s1 + $0x64] sm:$0xf]
  %v145 = vld [vmem:[%s1 + $0x68] sm:$0xf]
  %v146 = vld [vmem:[%s1 + $0x6c] sm:$0xf]
  %v147 = vld [vmem:[%s1 + $0x70] sm:$0xf]
  %v148 = vld [vmem:[%s1 + $0x74] sm:$0xf]
  %v149 = vld [vmem:[%s1 + $0x78] sm:$0xf]
  %v150 = vld [vmem:[%s1 + $0x7c] sm:$0xf]
  %v183 = vunpack.c.l.b16 %v87
  %v184 = vunpack.c.h.b16 %v87
  %v185 = vunpack.c.l.b16 %v88
  %v186 = vunpack.c.h.b16 %v88
  %v187 = vunpack.c.l.b16 %v89
  %v188 = vunpack.c.h.b16 %v89
  %v189 = vunpack.c.l.b16 %v90
  %v190 = vunpack.c.h.b16 %v90
  %v191 = vunpack.c.l.b16 %v91
  %v192 = vunpack.c.h.b16 %v91
  %v193 = vunpack.c.l.b16 %v92
  %v194 = vunpack.c.h.b16 %v92
  %v195 = vunpack.c.l.b16 %v93
  %v196 = vunpack.c.h.b16 %v93
  %v197 = vunpack.c.l.b16 %v94
  %v198 = vunpack.c.h.b16 %v94
  %v199 = vunpack.c.l.b16 %v95
  %v200 = vunpack.c.h.b16 %v95
  %v201 = vunpack.c.l.b16 %v96
  %v202 = vunpack.c.h.b16 %v96
  %v203 = vunpack.c.l.b16 %v97
  %v204 = vunpack.c.h.b16 %v97
  %v205 = vunpack.c.l.b16 %v98
  %v206 = vunpack.c.h.b16 %v98
  %v207 = vunpack.c.l.b16 %v99
  %v208 = vunpack.c.h.b16 %v99
  %v209 = vunpack.c.l.b16 %v100
  %v210 = vunpack.c.h.b16 %v100
  %v211 = vunpack.c.l.b16 %v101
  %v212 = vunpack.c.h.b16 %v101
  %v213 = vunpack.c.l.b16 %v102
  %v214 = vunpack.c.h.b16 %v102
  %v215 = vunpack.c.l.b16 %v103
  %v216 = vunpack.c.h.b16 %v103
  %v217 = vunpack.c.l.b16 %v104
  %v218 = vunpack.c.h.b16 %v104
  %v219 = vunpack.c.l.b16 %v105
  %v220 = vunpack.c.h.b16 %v105
  %v221 = vunpack.c.l.b16 %v106
  %v222 = vunpack.c.h.b16 %v106
  %v223 = vunpack.c.l.b16 %v107
  %v224 = vunpack.c.h.b16 %v107
  %v225 = vunpack.c.l.b16 %v108
  %v226 = vunpack.c.h.b16 %v108
  %v227 = vunpack.c.l.b16 %v109
  %v228 = vunpack.c.h.b16 %v109
  %v229 = vunpack.c.l.b16 %v110
  %v230 = vunpack.c.h.b16 %v110
  %v231 = vunpack.c.l.b16 %v111
  %v232 = vunpack.c.h.b16 %v111
  %v233 = vunpack.c.l.b16 %v112
  %v234 = vunpack.c.h.b16 %v112
  %v235 = vunpack.c.l.b16 %v113
  %v236 = vunpack.c.h.b16 %v113
  %v237 = vunpack.c.l.b16 %v114
  %v238 = vunpack.c.h.b16 %v114
  %v239 = vunpack.c.l.b16 %v115
  %v240 = vunpack.c.h.b16 %v115
  %v241 = vunpack.c.l.b16 %v116
  %v242 = vunpack.c.h.b16 %v116
  %v243 = vunpack.c.l.b16 %v117
  %v244 = vunpack.c.h.b16 %v117
  %v245 = vunpack.c.l.b16 %v118
  %v246 = vunpack.c.h.b16 %v118
  %v247 = vpack.c.b16 %v185, %v183
  %v248 = vpack.c.b16 %v186, %v184
  %v249 = vpack.c.b16 %v189, %v187
  %v250 = vpack.c.b16 %v190, %v188
  %v251 = vpack.c.b16 %v193, %v191
  %v252 = vpack.c.b16 %v194, %v192
  %v253 = vpack.c.b16 %v197, %v195
  %v254 = vpack.c.b16 %v198, %v196
  %v255 = vpack.c.b16 %v201, %v199
  %v256 = vpack.c.b16 %v202, %v200
  %v257 = vpack.c.b16 %v205, %v203
  %v258 = vpack.c.b16 %v206, %v204
  %v259 = vpack.c.b16 %v209, %v207
  %v260 = vpack.c.b16 %v210, %v208
  %v261 = vpack.c.b16 %v213, %v211
  %v262 = vpack.c.b16 %v214, %v212
  %v263 = vpack.c.b16 %v217, %v215
  %v264 = vpack.c.b16 %v218, %v216
  %v265 = vpack.c.b16 %v221, %v219
  %v266 = vpack.c.b16 %v222, %v220
  %v267 = vpack.c.b16 %v225, %v223
  %v268 = vpack.c.b16 %v226, %v224
  %v269 = vpack.c.b16 %v229, %v227
  %v270 = vpack.c.b16 %v230, %v228
  %v271 = vpack.c.b16 %v233, %v231
  %v272 = vpack.c.b16 %v234, %v232
  %v273 = vpack.c.b16 %v237, %v235
  %v274 = vpack.c.b16 %v238, %v236
  %v275 = vpack.c.b16 %v241, %v239
  %v276 = vpack.c.b16 %v242, %v240
  %v277 = vpack.c.b16 %v245, %v243
  %v278 = vpack.c.b16 %v246, %v244
  %v343 = vunpack.c.l.b16 %v119
  %v344 = vunpack.c.l.b16 %v120
  %v345 = vunpack.c.l.b16 %v121
  %v346 = vunpack.c.l.b16 %v122
  %v347 = vunpack.c.l.b16 %v123
  %v348 = vunpack.c.l.b16 %v124
  %v349 = vunpack.c.l.b16 %v125
  %v350 = vunpack.c.l.b16 %v126
  %v351 = vunpack.c.l.b16 %v127
  %v352 = vunpack.c.l.b16 %v128
  %v353 = vunpack.c.l.b16 %v129
  %v354 = vunpack.c.l.b16 %v130
  %v355 = vunpack.c.l.b16 %v131
  %v356 = vunpack.c.l.b16 %v132
  %v357 = vunpack.c.l.b16 %v133
  %v358 = vunpack.c.l.b16 %v134
  %v359 = vunpack.c.l.b16 %v135
  %v360 = vunpack.c.l.b16 %v136
  %v361 = vunpack.c.l.b16 %v137
  %v362 = vunpack.c.l.b16 %v138
  %v363 = vunpack.c.l.b16 %v139
  %v364 = vunpack.c.l.b16 %v140
  %v365 = vunpack.c.l.b16 %v141
  %v366 = vunpack.c.l.b16 %v142
  %v367 = vunpack.c.l.b16 %v143
  %v368 = vunpack.c.l.b16 %v144
  %v369 = vunpack.c.l.b16 %v145
  %v370 = vunpack.c.l.b16 %v146
  %v371 = vunpack.c.l.b16 %v147
  %v372 = vunpack.c.l.b16 %v148
  %v373 = vunpack.c.l.b16 %v149
  %v374 = vunpack.c.l.b16 %v150
  %v375 = vpack.c.b16 %v344, %v343
  %v376 = vpack.c.b16 %v346, %v345
  %v377 = vpack.c.b16 %v348, %v347
  %v378 = vpack.c.b16 %v350, %v349
  %v379 = vpack.c.b16 %v352, %v351
  %v380 = vpack.c.b16 %v354, %v353
  %v381 = vpack.c.b16 %v356, %v355
  %v382 = vpack.c.b16 %v358, %v357
  %v383 = vpack.c.b16 %v360, %v359
  %v384 = vpack.c.b16 %v362, %v361
  %v385 = vpack.c.b16 %v364, %v363
  %v386 = vpack.c.b16 %v366, %v365
  %v387 = vpack.c.b16 %v368, %v367
  %v388 = vpack.c.b16 %v370, %v369
  %v389 = vpack.c.b16 %v372, %v371
  %v390 = vpack.c.b16 %v374, %v373
  %407 = vmatpush.bf16.msra.mxu0 %v382
  %408 = vmatpush.bf16.msra.mxu0 %v381
  %409 = vmatpush.bf16.msra.mxu0 %v380
  %410 = vmatpush.bf16.msra.mxu0 %v379
  %411 = vmatpush.bf16.msra.mxu0 %v378
  %412 = vmatpush.bf16.msra.mxu0 %v377
  %413 = vmatpush.bf16.msra.mxu0 %v376
  %414 = vmatpush.bf16.msra.mxu0 %v375
  %415 = vmatmul.bf16.gmra.mxu0 %v247
  %v416 = vpop.f32.mrf.mxu0
  %v417 = vadd.f32 0.0, %v416
  %v418 = vpop.f32.mrf.mxu0
  %v419 = vadd.f32 0.0, %v418
  %420 = vmatmul.bf16.gmra.mxu0 %v249
  %v421 = vpop.f32.mrf.mxu0
  %v422 = vadd.f32 0.0, %v421
  %v423 = vpop.f32.mrf.mxu0
  %v424 = vadd.f32 0.0, %v423
  %425 = vmatmul.bf16.gmra.mxu0 %v251
  %v426 = vpop.f32.mrf.mxu0
  %v427 = vadd.f32 0.0, %v426
  %v428 = vpop.f32.mrf.mxu0
  %v429 = vadd.f32 0.0, %v428
  %430 = vmatmul.bf16.gmra.mxu0 %v253
  %v431 = vpop.f32.mrf.mxu0
  %v432 = vadd.f32 0.0, %v431
  %v433 = vpop.f32.mrf.mxu0
  %v434 = vadd.f32 0.0, %v433
  %435 = vmatmul.bf16.gmra.mxu0 %v255
  %v436 = vpop.f32.mrf.mxu0
  %v437 = vadd.f32 0.0, %v436
  %v438 = vpop.f32.mrf.mxu0
  %v439 = vadd.f32 0.0, %v438
  %440 = vmatmul.bf16.gmra.mxu0 %v257
  %v441 = vpop.f32.mrf.mxu0
  %v442 = vadd.f32 0.0, %v441
  %v443 = vpop.f32.mrf.mxu0
  %v444 = vadd.f32 0.0, %v443
  %445 = vmatmul.bf16.gmra.mxu0 %v259
  %v446 = vpop.f32.mrf.mxu0
  %v447 = vadd.f32 0.0, %v446
  %v448 = vpop.f32.mrf.mxu0
  %v449 = vadd.f32 0.0, %v448
  %450 = vmatmul.bf16.gmra.mxu0 %v261
  %v451 = vpop.f32.mrf.mxu0
  %v452 = vadd.f32 0.0, %v451
  %v453 = vpop.f32.mrf.mxu0
  %v454 = vadd.f32 0.0, %v453
  %455 = vmatmul.bf16.gmra.mxu0 %v263
  %v456 = vpop.f32.mrf.mxu0
  %v457 = vadd.f32 0.0, %v456
  %v458 = vpop.f32.mrf.mxu0
  %v459 = vadd.f32 0.0, %v458
  %460 = vmatmul.bf16.gmra.mxu0 %v265
  %v461 = vpop.f32.mrf.mxu0
  %v462 = vadd.f32 0.0, %v461
  %v463 = vpop.f32.mrf.mxu0
  %v464 = vadd.f32 0.0, %v463
  %465 = vmatmul.bf16.gmra.mxu0 %v267
  %v466 = vpop.f32.mrf.mxu0
  %v467 = vadd.f32 0.0, %v466
  %v468 = vpop.f32.mrf.mxu0
  %v469 = vadd.f32 0.0, %v468
  %470 = vmatmul.bf16.gmra.mxu0 %v269
  %v471 = vpop.f32.mrf.mxu0
  %v472 = vadd.f32 0.0, %v471
  %v473 = vpop.f32.mrf.mxu0
  %v474 = vadd.f32 0.0, %v473
  %475 = vmatmul.bf16.gmra.mxu0 %v271
  %v476 = vpop.f32.mrf.mxu0
  %v477 = vadd.f32 0.0, %v476
  %v478 = vpop.f32.mrf.mxu0
  %v479 = vadd.f32 0.0, %v478
  %480 = vmatmul.bf16.gmra.mxu0 %v273
  %v481 = vpop.f32.mrf.mxu0
  %v482 = vadd.f32 0.0, %v481
  %v483 = vpop.f32.mrf.mxu0
  %v484 = vadd.f32 0.0, %v483
  %485 = vmatmul.bf16.gmra.mxu0 %v275
  %v486 = vpop.f32.mrf.mxu0
  %v487 = vadd.f32 0.0, %v486
  %v488 = vpop.f32.mrf.mxu0
  %v489 = vadd.f32 0.0, %v488
  %490 = vmatmul.bf16.gmra.mxu0 %v277
  %v491 = vpop.f32.mrf.mxu0
  %v492 = vadd.f32 0.0, %v491
  %v493 = vpop.f32.mrf.mxu0
  %v494 = vadd.f32 0.0, %v493
  %495 = vdwg.mxu0
  %496 = vmatpush.bf16.msra.mxu0 %v390
  %497 = vmatpush.bf16.msra.mxu0 %v389
  %498 = vmatpush.bf16.msra.mxu0 %v388
  %499 = vmatpush.bf16.msra.mxu0 %v387
  %500 = vmatpush.bf16.msra.mxu0 %v386
  %501 = vmatpush.bf16.msra.mxu0 %v385
  %502 = vmatpush.bf16.msra.mxu0 %v384
  %503 = vmatpush.bf16.msra.mxu0 %v383
  %504 = vmatmul.bf16.gmra.mxu0 %v248
  %v505 = vpop.f32.mrf.mxu0
  %v506 = vadd.f32 %v417, %v505
  %v507 = vpop.f32.mrf.mxu0
  %v508 = vadd.f32 %v419, %v507
  %509 = vmatmul.bf16.gmra.mxu0 %v250
  %v510 = vpop.f32.mrf.mxu0
  %v511 = vadd.f32 %v422, %v510
  %v512 = vpop.f32.mrf.mxu0
  %v513 = vadd.f32 %v424, %v512
  %514 = vmatmul.bf16.gmra.mxu0 %v252
  %v515 = vpop.f32.mrf.mxu0
  %v516 = vadd.f32 %v427, %v515
  %v517 = vpop.f32.mrf.mxu0
  %v518 = vadd.f32 %v429, %v517
  %519 = vmatmul.bf16.gmra.mxu0 %v254
  %v520 = vpop.f32.mrf.mxu0
  %v521 = vadd.f32 %v432, %v520
  %v522 = vpop.f32.mrf.mxu0
  %v523 = vadd.f32 %v434, %v522
  %524 = vmatmul.bf16.gmra.mxu0 %v256
  %v525 = vpop.f32.mrf.mxu0
  %v526 = vadd.f32 %v437, %v525
  %v527 = vpop.f32.mrf.mxu0
  %v528 = vadd.f32 %v439, %v527
  %529 = vmatmul.bf16.gmra.mxu0 %v258
  %v530 = vpop.f32.mrf.mxu0
  %v531 = vadd.f32 %v442, %v530
  %v532 = vpop.f32.mrf.mxu0
  %v533 = vadd.f32 %v444, %v532
  %534 = vmatmul.bf16.gmra.mxu0 %v260
  %v535 = vpop.f32.mrf.mxu0
  %v536 = vadd.f32 %v447, %v535
  %v537 = vpop.f32.mrf.mxu0
  %v538 = vadd.f32 %v449, %v537
  %539 = vmatmul.bf16.gmra.mxu0 %v262
  %v540 = vpop.f32.mrf.mxu0
  %v541 = vadd.f32 %v452, %v540
  %v542 = vpop.f32.mrf.mxu0
  %v543 = vadd.f32 %v454, %v542
  %544 = vmatmul.bf16.gmra.mxu0 %v264
  %v545 = vpop.f32.mrf.mxu0
  %v546 = vadd.f32 %v457, %v545
  %v547 = vpop.f32.mrf.mxu0
  %v548 = vadd.f32 %v459, %v547
  %549 = vmatmul.bf16.gmra.mxu0 %v266
  %v550 = vpop.f32.mrf.mxu0
  %v551 = vadd.f32 %v462, %v550
  %v552 = vpop.f32.mrf.mxu0
  %v553 = vadd.f32 %v464, %v552
  %554 = vmatmul.bf16.gmra.mxu0 %v268
  %v555 = vpop.f32.mrf.mxu0
  %v556 = vadd.f32 %v467, %v555
  %v557 = vpop.f32.mrf.mxu0
  %v558 = vadd.f32 %v469, %v557
  %559 = vmatmul.bf16.gmra.mxu0 %v270
  %v560 = vpop.f32.mrf.mxu0
  %v561 = vadd.f32 %v472, %v560
  %v562 = vpop.f32.mrf.mxu0
  %v563 = vadd.f32 %v474, %v562
  %564 = vmatmul.bf16.gmra.mxu0 %v272
  %v565 = vpop.f32.mrf.mxu0
  %v566 = vadd.f32 %v477, %v565
  %v567 = vpop.f32.mrf.mxu0
  %v568 = vadd.f32 %v479, %v567
  %569 = vmatmul.bf16.gmra.mxu0 %v274
  %v570 = vpop.f32.mrf.mxu0
  %v571 = vadd.f32 %v482, %v570
  %v572 = vpop.f32.mrf.mxu0
  %v573 = vadd.f32 %v484, %v572
  %574 = vmatmul.bf16.gmra.mxu0 %v276
  %v575 = vpop.f32.mrf.mxu0
  %v576 = vadd.f32 %v487, %v575
  %v577 = vpop.f32.mrf.mxu0
  %v578 = vadd.f32 %v489, %v577
  %579 = vmatmul.bf16.gmra.mxu0 %v278
  %v580 = vpop.f32.mrf.mxu0
  %v581 = vadd.f32 %v492, %v580
  %v582 = vpop.f32.mrf.mxu0
  %v583 = vadd.f32 %v494, %v582
  %584 = vdwg.mxu0
  %v585 = vadd.f32 %v55, %v506
  %v586 = vadd.f32 %v56, %v508
  %v587 = vadd.f32 %v57, %v511
  %v588 = vadd.f32 %v58, %v513
  %v589 = vadd.f32 %v59, %v516
  %v590 = vadd.f32 %v60, %v518
  %v591 = vadd.f32 %v61, %v521
  %v592 = vadd.f32 %v62, %v523
  %v593 = vadd.f32 %v63, %v526
  %v594 = vadd.f32 %v64, %v528
  %v595 = vadd.f32 %v65, %v531
  %v596 = vadd.f32 %v66, %v533
  %v597 = vadd.f32 %v67, %v536
  %v598 = vadd.f32 %v68, %v538
  %v599 = vadd.f32 %v69, %v541
  %v600 = vadd.f32 %v70, %v543
  %v601 = vadd.f32 %v71, %v546
  %v602 = vadd.f32 %v72, %v548
  %v603 = vadd.f32 %v73, %v551
  %v604 = vadd.f32 %v74, %v553
  %v605 = vadd.f32 %v75, %v556
  %v606 = vadd.f32 %v76, %v558
  %v607 = vadd.f32 %v77, %v561
  %v608 = vadd.f32 %v78, %v563
  %v609 = vadd.f32 %v79, %v566
  %v610 = vadd.f32 %v80, %v568
  %v611 = vadd.f32 %v81, %v571
  %v612 = vadd.f32 %v82, %v573
  %v613 = vadd.f32 %v83, %v576
  %v614 = vadd.f32 %v84, %v578
  %v615 = vadd.f32 %v85, %v581
  %v616 = vadd.f32 %v86, %v583
  %617 = vst [vmem:[#allocation2] sm:$0xff] %v585
  %618 = vst [vmem:[#allocation2 + $0x8] sm:$0xff] %v586
  %619 = vst [vmem:[#allocation2 + $0x10] sm:$0xff] %v587
  %620 = vst [vmem:[#allocation2 + $0x18] sm:$0xff] %v588
  %621 = vst [vmem:[#allocation2 + $0x20] sm:$0xff] %v589
  %622 = vst [vmem:[#allocation2 + $0x28] sm:$0xff] %v590
  %623 = vst [vmem:[#allocation2 + $0x30] sm:$0xff] %v591
  %624 = vst [vmem:[#allocation2 + $0x38] sm:$0xff] %v592
  %625 = vst [vmem:[#allocation2 + $0x40] sm:$0xff] %v593
  %626 = vst [vmem:[#allocation2 + $0x48] sm:$0xff] %v594
  %627 = vst [vmem:[#allocation2 + $0x50] sm:$0xff] %v595
  %628 = vst [vmem:[#allocation2 + $0x58] sm:$0xff] %v596
  %629 = vst [vmem:[#allocation2 + $0x60] sm:$0xff] %v597
  %630 = vst [vmem:[#allocation2 + $0x68] sm:$0xff] %v598
  %631 = vst [vmem:[#allocation2 + $0x70] sm:$0xff] %v599
  %632 = vst [vmem:[#allocation2 + $0x78] sm:$0xff] %v600
  %633 = vst [vmem:[#allocation2 + $0x80] sm:$0xff] %v601
  %634 = vst [vmem:[#allocation2 + $0x88] sm:$0xff] %v602
  %635 = vst [vmem:[#allocation2 + $0x90] sm:$0xff] %v603
  %636 = vst [vmem:[#allocation2 + $0x98] sm:$0xff] %v604
  %637 = vst [vmem:[#allocation2 + $0xa0] sm:$0xff] %v605
  %638 = vst [vmem:[#allocation2 + $0xa8] sm:$0xff] %v606
  %639 = vst [vmem:[#allocation2 + $0xb0] sm:$0xff] %v607
  %640 = vst [vmem:[#allocation2 + $0xb8] sm:$0xff] %v608
  %641 = vst [vmem:[#allocation2 + $0xc0] sm:$0xff] %v609
  %642 = vst [vmem:[#allocation2 + $0xc8] sm:$0xff] %v610
  %643 = vst [vmem:[#allocation2 + $0xd0] sm:$0xff] %v611
  %644 = vst [vmem:[#allocation2 + $0xd8] sm:$0xff] %v612
  %645 = vst [vmem:[#allocation2 + $0xe0] sm:$0xff] %v613
  %646 = vst [vmem:[#allocation2 + $0xe8] sm:$0xff] %v614
  %647 = vst [vmem:[#allocation2 + $0xf0] sm:$0xff] %v615
  %648 = vst [vmem:[#allocation2 + $0xf8] sm:$0xff] %v616
  // Predicated region
  $region22: #{gcn_forward.3} parent=0 // pred_check
    %p649 = pneg %p19
  $region23: #{gcn_forward.3} parent=0 // pred_check_branch
    %651 = sbr.rel (%p649) target = $region25
  $region24: #{gcn_forward.3} parent=0 // pred_region
    %v652 = vld [vmem:[#allocation2] sm:$0xff]
    %v653 = vld [vmem:[#allocation2 + $0x8] sm:$0xff]
    %v654 = vld [vmem:[#allocation2 + $0x10] sm:$0xff]
    %v655 = vld [vmem:[#allocation2 + $0x18] sm:$0xff]
    %v656 = vld [vmem:[#allocation2 + $0x20] sm:$0xff]
    %v657 = vld [vmem:[#allocation2 + $0x28] sm:$0xff]
    %v658 = vld [vmem:[#allocation2 + $0x30] sm:$0xff]
    %v659 = vld [vmem:[#allocation2 + $0x38] sm:$0xff]
    %v660 = vld [vmem:[#allocation2 + $0x40] sm:$0xff]
    %v661 = vld [vmem:[#allocation2 + $0x48] sm:$0xff]
    %v662 = vld [vmem:[#allocation2 + $0x50] sm:$0xff]
    %v663 = vld [vmem:[#allocation2 + $0x58] sm:$0xff]
    %v664 = vld [vmem:[#allocation2 + $0x60] sm:$0xff]
    %v665 = vld [vmem:[#allocation2 + $0x68] sm:$0xff]
    %v666 = vld [vmem:[#allocation2 + $0x70] sm:$0xff]
    %v667 = vld [vmem:[#allocation2 + $0x78] sm:$0xff]
    %v668 = vld [vmem:[#allocation2 + $0x80] sm:$0xff]
    %v669 = vld [vmem:[#allocation2 + $0x88] sm:$0xff]
    %v670 = vld [vmem:[#allocation2 + $0x90] sm:$0xff]
    %v671 = vld [vmem:[#allocation2 + $0x98] sm:$0xff]
    %v672 = vld [vmem:[#allocation2 + $0xa0] sm:$0xff]
    %v673 = vld [vmem:[#allocation2 + $0xa8] sm:$0xff]
    %v674 = vld [vmem:[#allocation2 + $0xb0] sm:$0xff]
    %v675 = vld [vmem:[#allocation2 + $0xb8] sm:$0xff]
    %v676 = vld [vmem:[#allocation2 + $0xc0] sm:$0xff]
    %v677 = vld [vmem:[#allocation2 + $0xc8] sm:$0xff]
    %v678 = vld [vmem:[#allocation2 + $0xd0] sm:$0xff]
    %v679 = vld [vmem:[#allocation2 + $0xd8] sm:$0xff]
    %v680 = vld [vmem:[#allocation2 + $0xe0] sm:$0xff]
    %v681 = vld [vmem:[#allocation2 + $0xe8] sm:$0xff]
    %v682 = vld [vmem:[#allocation2 + $0xf0] sm:$0xff]
    %v683 = vld [vmem:[#allocation2 + $0xf8] sm:$0xff]
    %v684 = vpack.c.bf16 %v653, %v652
    %v685 = vpack.c.bf16 %v655, %v654
    %v686 = vpack.c.bf16 %v657, %v656
    %v687 = vpack.c.bf16 %v659, %v658
    %v688 = vpack.c.bf16 %v661, %v660
    %v689 = vpack.c.bf16 %v663, %v662
    %v690 = vpack.c.bf16 %v665, %v664
    %v691 = vpack.c.bf16 %v667, %v666
    %v692 = vpack.c.bf16 %v669, %v668
    %v693 = vpack.c.bf16 %v671, %v670
    %v694 = vpack.c.bf16 %v673, %v672
    %v695 = vpack.c.bf16 %v675, %v674
    %v696 = vpack.c.bf16 %v677, %v676
    %v697 = vpack.c.bf16 %v679, %v678
    %v698 = vpack.c.bf16 %v681, %v680
    %v699 = vpack.c.bf16 %v683, %v682
    %v700 = vld [vmem:[%s2] sm:$0xf]
    %v701 = vld [vmem:[%s2 + $0x4] sm:$0xf]
    %v702 = vld [vmem:[%s2 + $0x8] sm:$0xf]
    %v703 = vld [vmem:[%s2 + $0xc] sm:$0xf]
    %v704 = vld [vmem:[%s2 + $0x10] sm:$0xf]
    %v705 = vld [vmem:[%s2 + $0x14] sm:$0xf]
    %v706 = vld [vmem:[%s2 + $0x18] sm:$0xf]
    %v707 = vld [vmem:[%s2 + $0x1c] sm:$0xf]
    %v708 = vld [vmem:[%s2 + $0x20] sm:$0xf]
    %v709 = vld [vmem:[%s2 + $0x24] sm:$0xf]
    %v710 = vld [vmem:[%s2 + $0x28] sm:$0xf]
    %v711 = vld [vmem:[%s2 + $0x2c] sm:$0xf]
    %v712 = vld [vmem:[%s2 + $0x30] sm:$0xf]
    %v713 = vld [vmem:[%s2 + $0x34] sm:$0xf]
    %v714 = vld [vmem:[%s2 + $0x38] sm:$0xf]
    %v715 = vld [vmem:[%s2 + $0x3c] sm:$0xf]
    %v716 = vld [vmem:[%s3] sm:$0x1]
    %v718 = vperm.slane %v716, 0
    %v736 = vunpack.c.l.b16 %v700
    %v737 = vunpack.c.l.b16 %v701
    %v738 = vunpack.c.l.b16 %v702
    %v739 = vunpack.c.l.b16 %v703
    %v740 = vunpack.c.l.b16 %v704
    %v741 = vunpack.c.l.b16 %v705
    %v742 = vunpack.c.l.b16 %v706
    %v743 = vunpack.c.l.b16 %v707
    %v744 = vunpack.c.l.b16 %v708
    %v745 = vunpack.c.l.b16 %v709
    %v746 = vunpack.c.l.b16 %v710
    %v747 = vunpack.c.l.b16 %v711
    %v748 = vunpack.c.l.b16 %v712
    %v749 = vunpack.c.l.b16 %v713
    %v750 = vunpack.c.l.b16 %v714
    %v751 = vunpack.c.l.b16 %v715
    %v752 = vpack.c.b16 %v737, %v736
    %v753 = vpack.c.b16 %v739, %v738
    %v754 = vpack.c.b16 %v741, %v740
    %v755 = vpack.c.b16 %v743, %v742
    %v756 = vpack.c.b16 %v745, %v744
    %v757 = vpack.c.b16 %v747, %v746
    %v758 = vpack.c.b16 %v749, %v748
    %v759 = vpack.c.b16 %v751, %v750
    %768 = vmatpush.bf16.msra.mxu0 %v759
    %769 = vmatpush.bf16.msra.mxu0 %v758
    %770 = vmatpush.bf16.msra.mxu0 %v757
    %771 = vmatpush.bf16.msra.mxu0 %v756
    %772 = vmatpush.bf16.msra.mxu0 %v755
    %773 = vmatpush.bf16.msra.mxu0 %v754
    %774 = vmatpush.bf16.msra.mxu0 %v753
    %775 = vmatpush.bf16.msra.mxu0 %v752
    %776 = vmatmul.bf16.gmra.mxu0 %v684
    %v777 = vpop.f32.mrf.mxu0
    %v778 = vadd.f32 %v718, %v777
    %v779 = vpop.f32.mrf.mxu0
    %v780 = vadd.f32 %v718, %v779
    %781 = vmatmul.bf16.gmra.mxu0 %v685
    %v782 = vpop.f32.mrf.mxu0
    %v783 = vadd.f32 %v718, %v782
    %v784 = vpop.f32.mrf.mxu0
    %v785 = vadd.f32 %v718, %v784
    %786 = vmatmul.bf16.gmra.mxu0 %v686
    %v787 = vpop.f32.mrf.mxu0
    %v788 = vadd.f32 %v718, %v787
    %v789 = vpop.f32.mrf.mxu0
    %v790 = vadd.f32 %v718, %v789
    %791 = vmatmul.bf16.gmra.mxu0 %v687
    %v792 = vpop.f32.mrf.mxu0
    %v793 = vadd.f32 %v718, %v792
    %v794 = vpop.f32.mrf.mxu0
    %v795 = vadd.f32 %v718, %v794
    %796 = vmatmul.bf16.gmra.mxu0 %v688
    %v797 = vpop.f32.mrf.mxu0
    %v798 = vadd.f32 %v718, %v797
    %v799 = vpop.f32.mrf.mxu0
    %v800 = vadd.f32 %v718, %v799
    %801 = vmatmul.bf16.gmra.mxu0 %v689
    %v802 = vpop.f32.mrf.mxu0
    %v803 = vadd.f32 %v718, %v802
    %v804 = vpop.f32.mrf.mxu0
    %v805 = vadd.f32 %v718, %v804
    %806 = vmatmul.bf16.gmra.mxu0 %v690
    %v807 = vpop.f32.mrf.mxu0
    %v808 = vadd.f32 %v718, %v807
    %v809 = vpop.f32.mrf.mxu0
    %v810 = vadd.f32 %v718, %v809
    %811 = vmatmul.bf16.gmra.mxu0 %v691
    %v812 = vpop.f32.mrf.mxu0
    %v813 = vadd.f32 %v718, %v812
    %v814 = vpop.f32.mrf.mxu0
    %v815 = vadd.f32 %v718, %v814
    %816 = vmatmul.bf16.gmra.mxu0 %v692
    %v817 = vpop.f32.mrf.mxu0
    %v818 = vadd.f32 %v718, %v817
    %v819 = vpop.f32.mrf.mxu0
    %v820 = vadd.f32 %v718, %v819
    %821 = vmatmul.bf16.gmra.mxu0 %v693
    %v822 = vpop.f32.mrf.mxu0
    %v823 = vadd.f32 %v718, %v822
    %v824 = vpop.f32.mrf.mxu0
    %v825 = vadd.f32 %v718, %v824
    %826 = vmatmul.bf16.gmra.mxu0 %v694
    %v827 = vpop.f32.mrf.mxu0
    %v828 = vadd.f32 %v718, %v827
    %v829 = vpop.f32.mrf.mxu0
    %v830 = vadd.f32 %v718, %v829
    %831 = vmatmul.bf16.gmra.mxu0 %v695
    %v832 = vpop.f32.mrf.mxu0
    %v833 = vadd.f32 %v718, %v832
    %v834 = vpop.f32.mrf.mxu0
    %v835 = vadd.f32 %v718, %v834
    %836 = vmatmul.bf16.gmra.mxu0 %v696
    %v837 = vpop.f32.mrf.mxu0
    %v838 = vadd.f32 %v718, %v837
    %v839 = vpop.f32.mrf.mxu0
    %v840 = vadd.f32 %v718, %v839
    %841 = vmatmul.bf16.gmra.mxu0 %v697
    %v842 = vpop.f32.mrf.mxu0
    %v843 = vadd.f32 %v718, %v842
    %v844 = vpop.f32.mrf.mxu0
    %v845 = vadd.f32 %v718, %v844
    %846 = vmatmul.bf16.gmra.mxu0 %v698
    %v847 = vpop.f32.mrf.mxu0
    %v848 = vadd.f32 %v718, %v847
    %v849 = vpop.f32.mrf.mxu0
    %v850 = vadd.f32 %v718, %v849
    %851 = vmatmul.bf16.gmra.mxu0 %v699
    %v852 = vpop.f32.mrf.mxu0
    %v853 = vadd.f32 %v718, %v852
    %v854 = vpop.f32.mrf.mxu0
    %v855 = vadd.f32 %v718, %v854
    %856 = vdwg.mxu0
    %v857 = vsub.f32 0.0, %v778
    %v858 = vsub.f32 0.0, %v780
    %v859 = vsub.f32 0.0, %v783
    %v860 = vsub.f32 0.0, %v785
    %v861 = vsub.f32 0.0, %v788
    %v862 = vsub.f32 0.0, %v790
    %v863 = vsub.f32 0.0, %v793
    %v864 = vsub.f32 0.0, %v795
    %v865 = vsub.f32 0.0, %v798
    %v866 = vsub.f32 0.0, %v800
    %v867 = vsub.f32 0.0, %v803
    %v868 = vsub.f32 0.0, %v805
    %v869 = vsub.f32 0.0, %v808
    %v870 = vsub.f32 0.0, %v810
    %v871 = vsub.f32 0.0, %v813
    %v872 = vsub.f32 0.0, %v815
    %v873 = vsub.f32 0.0, %v818
    %v874 = vsub.f32 0.0, %v820
    %v875 = vsub.f32 0.0, %v823
    %v876 = vsub.f32 0.0, %v825
    %v877 = vsub.f32 0.0, %v828
    %v878 = vsub.f32 0.0, %v830
    %v879 = vsub.f32 0.0, %v833
    %v880 = vsub.f32 0.0, %v835
    %v881 = vsub.f32 0.0, %v838
    %v882 = vsub.f32 0.0, %v840
    %v883 = vsub.f32 0.0, %v843
    %v884 = vsub.f32 0.0, %v845
    %v885 = vsub.f32 0.0, %v848
    %v886 = vsub.f32 0.0, %v850
    %v887 = vsub.f32 0.0, %v853
    %v888 = vsub.f32 0.0, %v855
    %v889 = vmul.f32 %v857, 1.442695
    %v890 = vpow.pop %v889
    %v891 = vmul.f32 %v858, 1.442695
    %v892 = vpow.pop %v891
    %v893 = vmul.f32 %v859, 1.442695
    %v894 = vpow.pop %v893
    %v895 = vmul.f32 %v860, 1.442695
    %v896 = vpow.pop %v895
    %v897 = vmul.f32 %v861, 1.442695
    %v898 = vpow.pop %v897
    %v899 = vmul.f32 %v862, 1.442695
    %v900 = vpow.pop %v899
    %v901 = vmul.f32 %v863, 1.442695
    %v902 = vpow.pop %v901
    %v903 = vmul.f32 %v864, 1.442695
    %v904 = vpow.pop %v903
    %v905 = vmul.f32 %v865, 1.442695
    %v906 = vpow.pop %v905
    %v907 = vmul.f32 %v866, 1.442695
    %v908 = vpow.pop %v907
    %v909 = vmul.f32 %v867, 1.442695
    %v910 = vpow.pop %v909
    %v911 = vmul.f32 %v868, 1.442695
    %v912 = vpow.pop %v911
    %v913 = vmul.f32 %v869, 1.442695
    %v914 = vpow.pop %v913
    %v915 = vmul.f32 %v870, 1.442695
    %v916 = vpow.pop %v915
    %v917 = vmul.f32 %v871, 1.442695
    %v918 = vpow.pop %v917
    %v919 = vmul.f32 %v872, 1.442695
    %v920 = vpow.pop %v919
    %v921 = vmul.f32 %v873, 1.442695
    %v922 = vpow.pop %v921
    %v923 = vmul.f32 %v874, 1.442695
    %v924 = vpow.pop %v923
    %v925 = vmul.f32 %v875, 1.442695
    %v926 = vpow.pop %v925
    %v927 = vmul.f32 %v876, 1.442695
    %v928 = vpow.pop %v927
    %v929 = vmul.f32 %v877, 1.442695
    %v930 = vpow.pop %v929
    %v931 = vmul.f32 %v878, 1.442695
    %v932 = vpow.pop %v931
    %v933 = vmul.f32 %v879, 1.442695
    %v934 = vpow.pop %v933
    %v935 = vmul.f32 %v880, 1.442695
    %v936 = vpow.pop %v935
    %v937 = vmul.f32 %v881, 1.442695
    %v938 = vpow.pop %v937
    %v939 = vmul.f32 %v882, 1.442695
    %v940 = vpow.pop %v939
    %v941 = vmul.f32 %v883, 1.442695
    %v942 = vpow.pop %v941
    %v943 = vmul.f32 %v884, 1.442695
    %v944 = vpow.pop %v943
    %v945 = vmul.f32 %v885, 1.442695
    %v946 = vpow.pop %v945
    %v947 = vmul.f32 %v886, 1.442695
    %v948 = vpow.pop %v947
    %v949 = vmul.f32 %v887, 1.442695
    %v950 = vpow.pop %v949
    %v951 = vmul.f32 %v888, 1.442695
    %v952 = vpow.pop %v951
    %v953 = vadd.f32 %v890, 1.0
    %v954 = vadd.f32 %v892, 1.0
    %v955 = vadd.f32 %v894, 1.0
    %v956 = vadd.f32 %v896, 1.0
    %v957 = vadd.f32 %v898, 1.0
    %v958 = vadd.f32 %v900, 1.0
    %v959 = vadd.f32 %v902, 1.0
    %v960 = vadd.f32 %v904, 1.0
    %v961 = vadd.f32 %v906, 1.0
    %v962 = vadd.f32 %v908, 1.0
    %v963 = vadd.f32 %v910, 1.0
    %v964 = vadd.f32 %v912, 1.0
    %v965 = vadd.f32 %v914, 1.0
    %v966 = vadd.f32 %v916, 1.0
    %v967 = vadd.f32 %v918, 1.0
    %v968 = vadd.f32 %v920, 1.0
    %v969 = vadd.f32 %v922, 1.0
    %v970 = vadd.f32 %v924, 1.0
    %v971 = vadd.f32 %v926, 1.0
    %v972 = vadd.f32 %v928, 1.0
    %v973 = vadd.f32 %v930, 1.0
    %v974 = vadd.f32 %v932, 1.0
    %v975 = vadd.f32 %v934, 1.0
    %v976 = vadd.f32 %v936, 1.0
    %v977 = vadd.f32 %v938, 1.0
    %v978 = vadd.f32 %v940, 1.0
    %v979 = vadd.f32 %v942, 1.0
    %v980 = vadd.f32 %v944, 1.0
    %v981 = vadd.f32 %v946, 1.0
    %v982 = vadd.f32 %v948, 1.0
    %v983 = vadd.f32 %v950, 1.0
    %v984 = vadd.f32 %v952, 1.0
    %v985 = vrcp.pop %v953
    %v986 = vrcp.pop %v954
    %v987 = vrcp.pop %v955
    %v988 = vrcp.pop %v956
    %v989 = vrcp.pop %v957
    %v990 = vrcp.pop %v958
    %v991 = vrcp.pop %v959
    %v992 = vrcp.pop %v960
    %v993 = vrcp.pop %v961
    %v994 = vrcp.pop %v962
    %v995 = vrcp.pop %v963
    %v996 = vrcp.pop %v964
    %v997 = vrcp.pop %v965
    %v998 = vrcp.pop %v966
    %v999 = vrcp.pop %v967
    %v1000 = vrcp.pop %v968
    %v1001 = vrcp.pop %v969
    %v1002 = vrcp.pop %v970
    %v1003 = vrcp.pop %v971
    %v1004 = vrcp.pop %v972
    %v1005 = vrcp.pop %v973
    %v1006 = vrcp.pop %v974
    %v1007 = vrcp.pop %v975
    %v1008 = vrcp.pop %v976
    %v1009 = vrcp.pop %v977
    %v1010 = vrcp.pop %v978
    %v1011 = vrcp.pop %v979
    %v1012 = vrcp.pop %v980
    %v1013 = vrcp.pop %v981
    %v1014 = vrcp.pop %v982
    %v1015 = vrcp.pop %v983
    %v1016 = vrcp.pop %v984
    %1017 = vst [vmem:[%s4] sm:$0xff] %v985
    %1018 = vst [vmem:[%s4 + $0x8] sm:$0xff] %v986
    %1019 = vst [vmem:[%s4 + $0x10] sm:$0xff] %v987
    %1020 = vst [vmem:[%s4 + $0x18] sm:$0xff] %v988
    %1021 = vst [vmem:[%s4 + $0x20] sm:$0xff] %v989
    %1022 = vst [vmem:[%s4 + $0x28] sm:$0xff] %v990
    %1023 = vst [vmem:[%s4 + $0x30] sm:$0xff] %v991
    %1024 = vst [vmem:[%s4 + $0x38] sm:$0xff] %v992
    %1025 = vst [vmem:[%s4 + $0x40] sm:$0xff] %v993
    %1026 = vst [vmem:[%s4 + $0x48] sm:$0xff] %v994
    %1027 = vst [vmem:[%s4 + $0x50] sm:$0xff] %v995
    %1028 = vst [vmem:[%s4 + $0x58] sm:$0xff] %v996
    %1029 = vst [vmem:[%s4 + $0x60] sm:$0xff] %v997
    %1030 = vst [vmem:[%s4 + $0x68] sm:$0xff] %v998
    %1031 = vst [vmem:[%s4 + $0x70] sm:$0xff] %v999
    %1032 = vst [vmem:[%s4 + $0x78] sm:$0xff] %v1000
    %1033 = vst [vmem:[%s4 + $0x80] sm:$0xff] %v1001
    %1034 = vst [vmem:[%s4 + $0x88] sm:$0xff] %v1002
    %1035 = vst [vmem:[%s4 + $0x90] sm:$0xff] %v1003
    %1036 = vst [vmem:[%s4 + $0x98] sm:$0xff] %v1004
    %1037 = vst [vmem:[%s4 + $0xa0] sm:$0xff] %v1005
    %1038 = vst [vmem:[%s4 + $0xa8] sm:$0xff] %v1006
    %1039 = vst [vmem:[%s4 + $0xb0] sm:$0xff] %v1007
    %1040 = vst [vmem:[%s4 + $0xb8] sm:$0xff] %v1008
    %1041 = vst [vmem:[%s4 + $0xc0] sm:$0xff] %v1009
    %1042 = vst [vmem:[%s4 + $0xc8] sm:$0xff] %v1010
    %1043 = vst [vmem:[%s4 + $0xd0] sm:$0xff] %v1011
    %1044 = vst [vmem:[%s4 + $0xd8] sm:$0xff] %v1012
    %1045 = vst [vmem:[%s4 + $0xe0] sm:$0xff] %v1013
    %1046 = vst [vmem:[%s4 + $0xe8] sm:$0xff] %v1014
    %1047 = vst [vmem:[%s4 + $0xf0] sm:$0xff] %v1015
    %1048 = vst [vmem:[%s4 + $0xf8] sm:$0xff] %v1016
    %vm1049 = vcmp.ge.f32.partialorder %v985, 0.5
    %vm1050 = vcmp.ge.f32.partialorder %v986, 0.5
    %vm1051 = vcmp.ge.f32.partialorder %v987, 0.5
    %vm1052 = vcmp.ge.f32.partialorder %v988, 0.5
    %vm1053 = vcmp.ge.f32.partialorder %v989, 0.5
    %vm1054 = vcmp.ge.f32.partialorder %v990, 0.5
    %vm1055 = vcmp.ge.f32.partialorder %v991, 0.5
    %vm1056 = vcmp.ge.f32.partialorder %v992, 0.5
    %vm1057 = vcmp.ge.f32.partialorder %v993, 0.5
    %vm1058 = vcmp.ge.f32.partialorder %v994, 0.5
    %vm1059 = vcmp.ge.f32.partialorder %v995, 0.5
    %vm1060 = vcmp.ge.f32.partialorder %v996, 0.5
    %vm1061 = vcmp.ge.f32.partialorder %v997, 0.5
    %vm1062 = vcmp.ge.f32.partialorder %v998, 0.5
    %vm1063 = vcmp.ge.f32.partialorder %v999, 0.5
    %vm1064 = vcmp.ge.f32.partialorder %v1000, 0.5
    %vm1065 = vcmp.ge.f32.partialorder %v1001, 0.5
    %vm1066 = vcmp.ge.f32.partialorder %v1002, 0.5
    %vm1067 = vcmp.ge.f32.partialorder %v1003, 0.5
    %vm1068 = vcmp.ge.f32.partialorder %v1004, 0.5
    %vm1069 = vcmp.ge.f32.partialorder %v1005, 0.5
    %vm1070 = vcmp.ge.f32.partialorder %v1006, 0.5
    %vm1071 = vcmp.ge.f32.partialorder %v1007, 0.5
    %vm1072 = vcmp.ge.f32.partialorder %v1008, 0.5
    %vm1073 = vcmp.ge.f32.partialorder %v1009, 0.5
    %vm1074 = vcmp.ge.f32.partialorder %v1010, 0.5
    %vm1075 = vcmp.ge.f32.partialorder %v1011, 0.5
    %vm1076 = vcmp.ge.f32.partialorder %v1012, 0.5
    %vm1077 = vcmp.ge.f32.partialorder %v1013, 0.5
    %vm1078 = vcmp.ge.f32.partialorder %v1014, 0.5
    %vm1079 = vcmp.ge.f32.partialorder %v1015, 0.5
    %vm1080 = vcmp.ge.f32.partialorder %v1016, 0.5
    %v1081 = vsel %vm1049, 1.0, 0.0
    %v1082 = vsel %vm1050, 1.0, 0.0
    %v1083 = vsel %vm1051, 1.0, 0.0
    %v1084 = vsel %vm1052, 1.0, 0.0
    %v1085 = vsel %vm1053, 1.0, 0.0
    %v1086 = vsel %vm1054, 1.0, 0.0
    %v1087 = vsel %vm1055, 1.0, 0.0
    %v1088 = vsel %vm1056, 1.0, 0.0
    %v1089 = vsel %vm1057, 1.0, 0.0
    %v1090 = vsel %vm1058, 1.0, 0.0
    %v1091 = vsel %vm1059, 1.0, 0.0
    %v1092 = vsel %vm1060, 1.0, 0.0
    %v1093 = vsel %vm1061, 1.0, 0.0
    %v1094 = vsel %vm1062, 1.0, 0.0
    %v1095 = vsel %vm1063, 1.0, 0.0
    %v1096 = vsel %vm1064, 1.0, 0.0
    %v1097 = vsel %vm1065, 1.0, 0.0
    %v1098 = vsel %vm1066, 1.0, 0.0
    %v1099 = vsel %vm1067, 1.0, 0.0
    %v1100 = vsel %vm1068, 1.0, 0.0
    %v1101 = vsel %vm1069, 1.0, 0.0
    %v1102 = vsel %vm1070, 1.0, 0.0
    %v1103 = vsel %vm1071, 1.0, 0.0
    %v1104 = vsel %vm1072, 1.0, 0.0
    %v1105 = vsel %vm1073, 1.0, 0.0
    %v1106 = vsel %vm1074, 1.0, 0.0
    %v1107 = vsel %vm1075, 1.0, 0.0
    %v1108 = vsel %vm1076, 1.0, 0.0
    %v1109 = vsel %vm1077, 1.0, 0.0
    %v1110 = vsel %vm1078, 1.0, 0.0
    %v1111 = vsel %vm1079, 1.0, 0.0
    %v1112 = vsel %vm1080, 1.0, 0.0
    %1113 = vst [vmem:[%s5] sm:$0xff] %v1081
    %1114 = vst [vmem:[%s5 + $0x8] sm:$0xff] %v1082
    %1115 = vst [vmem:[%s5 + $0x10] sm:$0xff] %v1083
    %1116 = vst [vmem:[%s5 + $0x18] sm:$0xff] %v1084
    %1117 = vst [vmem:[%s5 + $0x20] sm:$0xff] %v1085
    %1118 = vst [vmem:[%s5 + $0x28] sm:$0xff] %v1086
    %1119 = vst [vmem:[%s5 + $0x30] sm:$0xff] %v1087
    %1120 = vst [vmem:[%s5 + $0x38] sm:$0xff] %v1088
    %1121 = vst [vmem:[%s5 + $0x40] sm:$0xff] %v1089
    %1122 = vst [vmem:[%s5 + $0x48] sm:$0xff] %v1090
    %1123 = vst [vmem:[%s5 + $0x50] sm:$0xff] %v1091
    %1124 = vst [vmem:[%s5 + $0x58] sm:$0xff] %v1092
    %1125 = vst [vmem:[%s5 + $0x60] sm:$0xff] %v1093
    %1126 = vst [vmem:[%s5 + $0x68] sm:$0xff] %v1094
    %1127 = vst [vmem:[%s5 + $0x70] sm:$0xff] %v1095
    %1128 = vst [vmem:[%s5 + $0x78] sm:$0xff] %v1096
    %1129 = vst [vmem:[%s5 + $0x80] sm:$0xff] %v1097
    %1130 = vst [vmem:[%s5 + $0x88] sm:$0xff] %v1098
    %1131 = vst [vmem:[%s5 + $0x90] sm:$0xff] %v1099
    %1132 = vst [vmem:[%s5 + $0x98] sm:$0xff] %v1100
    %1133 = vst [vmem:[%s5 + $0xa0] sm:$0xff] %v1101
    %1134 = vst [vmem:[%s5 + $0xa8] sm:$0xff] %v1102
    %1135 = vst [vmem:[%s5 + $0xb0] sm:$0xff] %v1103
    %1136 = vst [vmem:[%s5 + $0xb8] sm:$0xff] %v1104
    %1137 = vst [vmem:[%s5 + $0xc0] sm:$0xff] %v1105
    %1138 = vst [vmem:[%s5 + $0xc8] sm:$0xff] %v1106
    %1139 = vst [vmem:[%s5 + $0xd0] sm:$0xff] %v1107
    %1140 = vst [vmem:[%s5 + $0xd8] sm:$0xff] %v1108
    %1141 = vst [vmem:[%s5 + $0xe0] sm:$0xff] %v1109
    %1142 = vst [vmem:[%s5 + $0xe8] sm:$0xff] %v1110
    %1143 = vst [vmem:[%s5 + $0xf0] sm:$0xff] %v1111
    %1144 = vst [vmem:[%s5 + $0xf8] sm:$0xff] %v1112
  $region25: #{gcn_forward.3} parent=0 // pred_fallthru
    _
  // Predicated region
  $region26: #{gcn_forward.3} parent=0 // pred_check
    _
  $region27: #{gcn_forward.3} parent=0 // pred_check_branch
    %1146 = sbr.rel (0) target = $region29
  $region28: #{gcn_forward.3} parent=0 // pred_region
    _
  $region29: #{gcn_forward.3} parent=0 // pred_fallthru
    _
  // Predicated region
  $region30: #{gcn_forward.3} parent=0 // pred_check
    _
  $region31: #{gcn_forward.3} parent=0 // pred_check_branch
    %1148 = sbr.rel (0) target = $region33
  $region32: #{gcn_forward.3} parent=0 // pred_region
    _
  $region33: #{gcn_forward.3} parent=0 // pred_fallthru
    _
  // Predicated region
  $region34: #{gcn_forward.3} parent=0 // pred_check
    _
  $region35: #{gcn_forward.3} parent=0 // pred_check_branch
    %1150 = sbr.rel (0) target = $region37
  $region36: #{gcn_forward.3} parent=0 // pred_region
    _
  $region37: #{gcn_forward.3} parent=0 // pred_fallthru
    _
  // Predicated region
  $region38: #{gcn_forward.3} parent=0 // pred_check
    _
  $region39: #{gcn_forward.3} parent=0 // pred_check_branch
    %1152 = sbr.rel (0) target = $region41
  $region40: #{gcn_forward.3} parent=0 // pred_region
    _
  $region41: #{gcn_forward.3} parent=0 // pred_fallthru
    _

// kernel: gcn_forward.2
$region0: #{gcn_forward.2}
  #allocation0 [shape = 'u32[]', space=smem, size = 0x4, offset = 0x4, fixed_abs, tag = 'smem constant byte address 0x4 - core index']
  #allocation1 [shape = 'u32[72,128]{1,0:T(1,128)}', space=vmem, size = 0x9000, scoped, tag = 'internal scratch']
  #allocation2 [shape = 'f32[256,128]{1,0:T(8,128)}', space=vmem, size = 0x20000, scoped, tag = 'scratch operand']
  %s0 = inlined_call_operand.vmem [shape: bf16[256,256], index: 0, kind: input, shape index: {}]
  %s1 = inlined_call_operand.vmem [shape: bf16[256,128], index: 1, kind: input, shape index: {}]
  %s2 = inlined_call_operand.vmem [shape: bf16[128,128], index: 2, kind: input, shape index: {}]
  %s3 = inlined_call_operand.vmem [shape: f32[1,128], index: 3, kind: input, shape index: {}]
  %s4 = inlined_call_operand.vmem [shape: f32[256,128], index: 4, kind: output, shape index: {}]
  %s5 = sld [smem:[#allocation0]]
  $region34: #{gcn_forward.2} parent=0
    _
  %s7 = ssub.s32 1, %s5
  %s8 = scalar_select 0, %s7, %s5
  // Predicated region
  $region2: #{gcn_forward.2} parent=0 // pred_check
    _
  $region3: #{gcn_forward.2} parent=0 // pred_check_branch
    %10 = sbr.rel (0) target = $region5
  $region4: #{gcn_forward.2} parent=0 // pred_region
    _
  $region5: #{gcn_forward.2} parent=0 // pred_fallthru
    _
  // Predicated region
  $region6: #{gcn_forward.2} parent=0 // pred_check
    _
  $region7: #{gcn_forward.2} parent=0 // pred_check_branch
    %12 = sbr.rel (0) target = $region9
  $region8: #{gcn_forward.2} parent=0 // pred_region
    _
  $region9: #{gcn_forward.2} parent=0 // pred_fallthru
    _
  // Predicated region
  $region10: #{gcn_forward.2} parent=0 // pred_check
    _
  $region11: #{gcn_forward.2} parent=0 // pred_check_branch
    %14 = sbr.rel (0) target = $region13
  $region12: #{gcn_forward.2} parent=0 // pred_region
    _
  $region13: #{gcn_forward.2} parent=0 // pred_fallthru
    _
  // Predicated region
  $region14: #{gcn_forward.2} parent=0 // pred_check
    _
  $region15: #{gcn_forward.2} parent=0 // pred_check_branch
    %16 = sbr.rel (0) target = $region17
  $region16: #{gcn_forward.2} parent=0 // pred_region
    _
  $region17: #{gcn_forward.2} parent=0 // pred_fallthru
    _
  %p17 = scmp.eq.s32.totalorder 0, 0
  // Predicated region
  $region18: #{gcn_forward.2} parent=0 // pred_check
    %p18 = pneg %p17
  $region19: #{gcn_forward.2} parent=0 // pred_check_branch
    %20 = sbr.rel (%p18) target = $region21
  $region20: #{gcn_forward.2} parent=0 // pred_region
    %21 = vst [vmem:[#allocation2] sm:$0xff] 0.0
    %22 = vst [vmem:[#allocation2 + $0x8] sm:$0xff] 0.0
    %23 = vst [vmem:[#allocation2 + $0x10] sm:$0xff] 0.0
    %24 = vst [vmem:[#allocation2 + $0x18] sm:$0xff] 0.0
    %25 = vst [vmem:[#allocation2 + $0x20] sm:$0xff] 0.0
    %26 = vst [vmem:[#allocation2 + $0x28] sm:$0xff] 0.0
    %27 = vst [vmem:[#allocation2 + $0x30] sm:$0xff] 0.0
    %28 = vst [vmem:[#allocation2 + $0x38] sm:$0xff] 0.0
    %29 = vst [vmem:[#allocation2 + $0x40] sm:$0xff] 0.0
    %30 = vst [vmem:[#allocation2 + $0x48] sm:$0xff] 0.0
    %31 = vst [vmem:[#allocation2 + $0x50] sm:$0xff] 0.0
    %32 = vst [vmem:[#allocation2 + $0x58] sm:$0xff] 0.0
    %33 = vst [vmem:[#allocation2 + $0x60] sm:$0xff] 0.0
    %34 = vst [vmem:[#allocation2 + $0x68] sm:$0xff] 0.0
    %35 = vst [vmem:[#allocation2 + $0x70] sm:$0xff] 0.0
    %36 = vst [vmem:[#allocation2 + $0x78] sm:$0xff] 0.0
    %37 = vst [vmem:[#allocation2 + $0x80] sm:$0xff] 0.0
    %38 = vst [vmem:[#allocation2 + $0x88] sm:$0xff] 0.0
    %39 = vst [vmem:[#allocation2 + $0x90] sm:$0xff] 0.0
    %40 = vst [vmem:[#allocation2 + $0x98] sm:$0xff] 0.0
    %41 = vst [vmem:[#allocation2 + $0xa0] sm:$0xff] 0.0
    %42 = vst [vmem:[#allocation2 + $0xa8] sm:$0xff] 0.0
    %43 = vst [vmem:[#allocation2 + $0xb0] sm:$0xff] 0.0
    %44 = vst [vmem:[#allocation2 + $0xb8] sm:$0xff] 0.0
    %45 = vst [vmem:[#allocation2 + $0xc0] sm:$0xff] 0.0
    %46 = vst [vmem:[#allocation2 + $0xc8] sm:$0xff] 0.0
    %47 = vst [vmem:[#allocation2 + $0xd0] sm:$0xff] 0.0
    %48 = vst [vmem:[#allocation2 + $0xd8] sm:$0xff] 0.0
    %49 = vst [vmem:[#allocation2 + $0xe0] sm:$0xff] 0.0
    %50 = vst [vmem:[#allocation2 + $0xe8] sm:$0xff] 0.0
    %51 = vst [vmem:[#allocation2 + $0xf0] sm:$0xff] 0.0
    %52 = vst [vmem:[#allocation2 + $0xf8] sm:$0xff] 0.0
  $region21: #{gcn_forward.2} parent=0 // pred_fallthru
    _
  %v53 = vld [vmem:[#allocation2] sm:$0xff]
  %v54 = vld [vmem:[#allocation2 + $0x8] sm:$0xff]
  %v55 = vld [vmem:[#allocation2 + $0x10] sm:$0xff]
  %v56 = vld [vmem:[#allocation2 + $0x18] sm:$0xff]
  %v57 = vld [vmem:[#allocation2 + $0x20] sm:$0xff]
  %v58 = vld [vmem:[#allocation2 + $0x28] sm:$0xff]
  %v59 = vld [vmem:[#allocation2 + $0x30] sm:$0xff]
  %v60 = vld [vmem:[#allocation2 + $0x38] sm:$0xff]
  %v61 = vld [vmem:[#allocation2 + $0x40] sm:$0xff]
  %v62 = vld [vmem:[#allocation2 + $0x48] sm:$0xff]
  %v63 = vld [vmem:[#allocation2 + $0x50] sm:$0xff]
  %v64 = vld [vmem:[#allocation2 + $0x58] sm:$0xff]
  %v65 = vld [vmem:[#allocation2 + $0x60] sm:$0xff]
  %v66 = vld [vmem:[#allocation2 + $0x68] sm:$0xff]
  %v67 = vld [vmem:[#allocation2 + $0x70] sm:$0xff]
  %v68 = vld [vmem:[#allocation2 + $0x78] sm:$0xff]
  %v69 = vld [vmem:[#allocation2 + $0x80] sm:$0xff]
  %v70 = vld [vmem:[#allocation2 + $0x88] sm:$0xff]
  %v71 = vld [vmem:[#allocation2 + $0x90] sm:$0xff]
  %v72 = vld [vmem:[#allocation2 + $0x98] sm:$0xff]
  %v73 = vld [vmem:[#allocation2 + $0xa0] sm:$0xff]
  %v74 = vld [vmem:[#allocation2 + $0xa8] sm:$0xff]
  %v75 = vld [vmem:[#allocation2 + $0xb0] sm:$0xff]
  %v76 = vld [vmem:[#allocation2 + $0xb8] sm:$0xff]
  %v77 = vld [vmem:[#allocation2 + $0xc0] sm:$0xff]
  %v78 = vld [vmem:[#allocation2 + $0xc8] sm:$0xff]
  %v79 = vld [vmem:[#allocation2 + $0xd0] sm:$0xff]
  %v80 = vld [vmem:[#allocation2 + $0xd8] sm:$0xff]
  %v81 = vld [vmem:[#allocation2 + $0xe0] sm:$0xff]
  %v82 = vld [vmem:[#allocation2 + $0xe8] sm:$0xff]
  %v83 = vld [vmem:[#allocation2 + $0xf0] sm:$0xff]
  %v84 = vld [vmem:[#allocation2 + $0xf8] sm:$0xff]
  %v85 = vld [vmem:[%s0] sm:$0xff]
  %v86 = vld [vmem:[%s0 + $0x8] sm:$0xff]
  %v87 = vld [vmem:[%s0 + $0x10] sm:$0xff]
  %v88 = vld [vmem:[%s0 + $0x18] sm:$0xff]
  %v89 = vld [vmem:[%s0 + $0x20] sm:$0xff]
  %v90 = vld [vmem:[%s0 + $0x28] sm:$0xff]
  %v91 = vld [vmem:[%s0 + $0x30] sm:$0xff]
  %v92 = vld [vmem:[%s0 + $0x38] sm:$0xff]
  %v93 = vld [vmem:[%s0 + $0x40] sm:$0xff]
  %v94 = vld [vmem:[%s0 + $0x48] sm:$0xff]
  %v95 = vld [vmem:[%s0 + $0x50] sm:$0xff]
  %v96 = vld [vmem:[%s0 + $0x58] sm:$0xff]
  %v97 = vld [vmem:[%s0 + $0x60] sm:$0xff]
  %v98 = vld [vmem:[%s0 + $0x68] sm:$0xff]
  %v99 = vld [vmem:[%s0 + $0x70] sm:$0xff]
  %v100 = vld [vmem:[%s0 + $0x78] sm:$0xff]
  %v101 = vld [vmem:[%s0 + $0x80] sm:$0xff]
  %v102 = vld [vmem:[%s0 + $0x88] sm:$0xff]
  %v103 = vld [vmem:[%s0 + $0x90] sm:$0xff]
  %v104 = vld [vmem:[%s0 + $0x98] sm:$0xff]
  %v105 = vld [vmem:[%s0 + $0xa0] sm:$0xff]
  %v106 = vld [vmem:[%s0 + $0xa8] sm:$0xff]
  %v107 = vld [vmem:[%s0 + $0xb0] sm:$0xff]
  %v108 = vld [vmem:[%s0 + $0xb8] sm:$0xff]
  %v109 = vld [vmem:[%s0 + $0xc0] sm:$0xff]
  %v110 = vld [vmem:[%s0 + $0xc8] sm:$0xff]
  %v111 = vld [vmem:[%s0 + $0xd0] sm:$0xff]
  %v112 = vld [vmem:[%s0 + $0xd8] sm:$0xff]
  %v113 = vld [vmem:[%s0 + $0xe0] sm:$0xff]
  %v114 = vld [vmem:[%s0 + $0xe8] sm:$0xff]
  %v115 = vld [vmem:[%s0 + $0xf0] sm:$0xff]
  %v116 = vld [vmem:[%s0 + $0xf8] sm:$0xff]
  %v117 = vld [vmem:[%s1] sm:$0xf]
  %v118 = vld [vmem:[%s1 + $0x4] sm:$0xf]
  %v119 = vld [vmem:[%s1 + $0x8] sm:$0xf]
  %v120 = vld [vmem:[%s1 + $0xc] sm:$0xf]
  %v121 = vld [vmem:[%s1 + $0x10] sm:$0xf]
  %v122 = vld [vmem:[%s1 + $0x14] sm:$0xf]
  %v123 = vld [vmem:[%s1 + $0x18] sm:$0xf]
  %v124 = vld [vmem:[%s1 + $0x1c] sm:$0xf]
  %v125 = vld [vmem:[%s1 + $0x20] sm:$0xf]
  %v126 = vld [vmem:[%s1 + $0x24] sm:$0xf]
  %v127 = vld [vmem:[%s1 + $0x28] sm:$0xf]
  %v128 = vld [vmem:[%s1 + $0x2c] sm:$0xf]
  %v129 = vld [vmem:[%s1 + $0x30] sm:$0xf]
  %v130 = vld [vmem:[%s1 + $0x34] sm:$0xf]
  %v131 = vld [vmem:[%s1 + $0x38] sm:$0xf]
  %v132 = vld [vmem:[%s1 + $0x3c] sm:$0xf]
  %v133 = vld [vmem:[%s1 + $0x40] sm:$0xf]
  %v134 = vld [vmem:[%s1 + $0x44] sm:$0xf]
  %v135 = vld [vmem:[%s1 + $0x48] sm:$0xf]
  %v136 = vld [vmem:[%s1 + $0x4c] sm:$0xf]
  %v137 = vld [vmem:[%s1 + $0x50] sm:$0xf]
  %v138 = vld [vmem:[%s1 + $0x54] sm:$0xf]
  %v139 = vld [vmem:[%s1 + $0x58] sm:$0xf]
  %v140 = vld [vmem:[%s1 + $0x5c] sm:$0xf]
  %v141 = vld [vmem:[%s1 + $0x60] sm:$0xf]
  %v142 = vld [vmem:[%s1 + $0x64] sm:$0xf]
  %v143 = vld [vmem:[%s1 + $0x68] sm:$0xf]
  %v144 = vld [vmem:[%s1 + $0x6c] sm:$0xf]
  %v145 = vld [vmem:[%s1 + $0x70] sm:$0xf]
  %v146 = vld [vmem:[%s1 + $0x74] sm:$0xf]
  %v147 = vld [vmem:[%s1 + $0x78] sm:$0xf]
  %v148 = vld [vmem:[%s1 + $0x7c] sm:$0xf]
  %v181 = vunpack.c.l.b16 %v85
  %v182 = vunpack.c.h.b16 %v85
  %v183 = vunpack.c.l.b16 %v86
  %v184 = vunpack.c.h.b16 %v86
  %v185 = vunpack.c.l.b16 %v87
  %v186 = vunpack.c.h.b16 %v87
  %v187 = vunpack.c.l.b16 %v88
  %v188 = vunpack.c.h.b16 %v88
  %v189 = vunpack.c.l.b16 %v89
  %v190 = vunpack.c.h.b16 %v89
  %v191 = vunpack.c.l.b16 %v90
  %v192 = vunpack.c.h.b16 %v90
  %v193 = vunpack.c.l.b16 %v91
  %v194 = vunpack.c.h.b16 %v91
  %v195 = vunpack.c.l.b16 %v92
  %v196 = vunpack.c.h.b16 %v92
  %v197 = vunpack.c.l.b16 %v93
  %v198 = vunpack.c.h.b16 %v93
  %v199 = vunpack.c.l.b16 %v94
  %v200 = vunpack.c.h.b16 %v94
  %v201 = vunpack.c.l.b16 %v95
  %v202 = vunpack.c.h.b16 %v95
  %v203 = vunpack.c.l.b16 %v96
  %v204 = vunpack.c.h.b16 %v96
  %v205 = vunpack.c.l.b16 %v97
  %v206 = vunpack.c.h.b16 %v97
  %v207 = vunpack.c.l.b16 %v98
  %v208 = vunpack.c.h.b16 %v98
  %v209 = vunpack.c.l.b16 %v99
  %v210 = vunpack.c.h.b16 %v99
  %v211 = vunpack.c.l.b16 %v100
  %v212 = vunpack.c.h.b16 %v100
  %v213 = vunpack.c.l.b16 %v101
  %v214 = vunpack.c.h.b16 %v101
  %v215 = vunpack.c.l.b16 %v102
  %v216 = vunpack.c.h.b16 %v102
  %v217 = vunpack.c.l.b16 %v103
  %v218 = vunpack.c.h.b16 %v103
  %v219 = vunpack.c.l.b16 %v104
  %v220 = vunpack.c.h.b16 %v104
  %v221 = vunpack.c.l.b16 %v105
  %v222 = vunpack.c.h.b16 %v105
  %v223 = vunpack.c.l.b16 %v106
  %v224 = vunpack.c.h.b16 %v106
  %v225 = vunpack.c.l.b16 %v107
  %v226 = vunpack.c.h.b16 %v107
  %v227 = vunpack.c.l.b16 %v108
  %v228 = vunpack.c.h.b16 %v108
  %v229 = vunpack.c.l.b16 %v109
  %v230 = vunpack.c.h.b16 %v109
  %v231 = vunpack.c.l.b16 %v110
  %v232 = vunpack.c.h.b16 %v110
  %v233 = vunpack.c.l.b16 %v111
  %v234 = vunpack.c.h.b16 %v111
  %v235 = vunpack.c.l.b16 %v112
  %v236 = vunpack.c.h.b16 %v112
  %v237 = vunpack.c.l.b16 %v113
  %v238 = vunpack.c.h.b16 %v113
  %v239 = vunpack.c.l.b16 %v114
  %v240 = vunpack.c.h.b16 %v114
  %v241 = vunpack.c.l.b16 %v115
  %v242 = vunpack.c.h.b16 %v115
  %v243 = vunpack.c.l.b16 %v116
  %v244 = vunpack.c.h.b16 %v116
  %v245 = vpack.c.b16 %v183, %v181
  %v246 = vpack.c.b16 %v184, %v182
  %v247 = vpack.c.b16 %v187, %v185
  %v248 = vpack.c.b16 %v188, %v186
  %v249 = vpack.c.b16 %v191, %v189
  %v250 = vpack.c.b16 %v192, %v190
  %v251 = vpack.c.b16 %v195, %v193
  %v252 = vpack.c.b16 %v196, %v194
  %v253 = vpack.c.b16 %v199, %v197
  %v254 = vpack.c.b16 %v200, %v198
  %v255 = vpack.c.b16 %v203, %v201
  %v256 = vpack.c.b16 %v204, %v202
  %v257 = vpack.c.b16 %v207, %v205
  %v258 = vpack.c.b16 %v208, %v206
  %v259 = vpack.c.b16 %v211, %v209
  %v260 = vpack.c.b16 %v212, %v210
  %v261 = vpack.c.b16 %v215, %v213
  %v262 = vpack.c.b16 %v216, %v214
  %v263 = vpack.c.b16 %v219, %v217
  %v264 = vpack.c.b16 %v220, %v218
  %v265 = vpack.c.b16 %v223, %v221
  %v266 = vpack.c.b16 %v224, %v222
  %v267 = vpack.c.b16 %v227, %v225
  %v268 = vpack.c.b16 %v228, %v226
  %v269 = vpack.c.b16 %v231, %v229
  %v270 = vpack.c.b16 %v232, %v230
  %v271 = vpack.c.b16 %v235, %v233
  %v272 = vpack.c.b16 %v236, %v234
  %v273 = vpack.c.b16 %v239, %v237
  %v274 = vpack.c.b16 %v240, %v238
  %v275 = vpack.c.b16 %v243, %v241
  %v276 = vpack.c.b16 %v244, %v242
  %v341 = vunpack.c.l.b16 %v117
  %v342 = vunpack.c.l.b16 %v118
  %v343 = vunpack.c.l.b16 %v119
  %v344 = vunpack.c.l.b16 %v120
  %v345 = vunpack.c.l.b16 %v121
  %v346 = vunpack.c.l.b16 %v122
  %v347 = vunpack.c.l.b16 %v123
  %v348 = vunpack.c.l.b16 %v124
  %v349 = vunpack.c.l.b16 %v125
  %v350 = vunpack.c.l.b16 %v126
  %v351 = vunpack.c.l.b16 %v127
  %v352 = vunpack.c.l.b16 %v128
  %v353 = vunpack.c.l.b16 %v129
  %v354 = vunpack.c.l.b16 %v130
  %v355 = vunpack.c.l.b16 %v131
  %v356 = vunpack.c.l.b16 %v132
  %v357 = vunpack.c.l.b16 %v133
  %v358 = vunpack.c.l.b16 %v134
  %v359 = vunpack.c.l.b16 %v135
  %v360 = vunpack.c.l.b16 %v136
  %v361 = vunpack.c.l.b16 %v137
  %v362 = vunpack.c.l.b16 %v138
  %v363 = vunpack.c.l.b16 %v139
  %v364 = vunpack.c.l.b16 %v140
  %v365 = vunpack.c.l.b16 %v141
  %v366 = vunpack.c.l.b16 %v142
  %v367 = vunpack.c.l.b16 %v143
  %v368 = vunpack.c.l.b16 %v144
  %v369 = vunpack.c.l.b16 %v145
  %v370 = vunpack.c.l.b16 %v146
  %v371 = vunpack.c.l.b16 %v147
  %v372 = vunpack.c.l.b16 %v148
  %v373 = vpack.c.b16 %v342, %v341
  %v374 = vpack.c.b16 %v344, %v343
  %v375 = vpack.c.b16 %v346, %v345
  %v376 = vpack.c.b16 %v348, %v347
  %v377 = vpack.c.b16 %v350, %v349
  %v378 = vpack.c.b16 %v352, %v351
  %v379 = vpack.c.b16 %v354, %v353
  %v380 = vpack.c.b16 %v356, %v355
  %v381 = vpack.c.b16 %v358, %v357
  %v382 = vpack.c.b16 %v360, %v359
  %v383 = vpack.c.b16 %v362, %v361
  %v384 = vpack.c.b16 %v364, %v363
  %v385 = vpack.c.b16 %v366, %v365
  %v386 = vpack.c.b16 %v368, %v367
  %v387 = vpack.c.b16 %v370, %v369
  %v388 = vpack.c.b16 %v372, %v371
  %405 = vmatpush.bf16.msra.mxu0 %v380
  %406 = vmatpush.bf16.msra.mxu0 %v379
  %407 = vmatpush.bf16.msra.mxu0 %v378
  %408 = vmatpush.bf16.msra.mxu0 %v377
  %409 = vmatpush.bf16.msra.mxu0 %v376
  %410 = vmatpush.bf16.msra.mxu0 %v375
  %411 = vmatpush.bf16.msra.mxu0 %v374
  %412 = vmatpush.bf16.msra.mxu0 %v373
  %413 = vmatmul.bf16.gmra.mxu0 %v245
  %v414 = vpop.f32.mrf.mxu0
  %v415 = vadd.f32 0.0, %v414
  %v416 = vpop.f32.mrf.mxu0
  %v417 = vadd.f32 0.0, %v416
  %418 = vmatmul.bf16.gmra.mxu0 %v247
  %v419 = vpop.f32.mrf.mxu0
  %v420 = vadd.f32 0.0, %v419
  %v421 = vpop.f32.mrf.mxu0
  %v422 = vadd.f32 0.0, %v421
  %423 = vmatmul.bf16.gmra.mxu0 %v249
  %v424 = vpop.f32.mrf.mxu0
  %v425 = vadd.f32 0.0, %v424
  %v426 = vpop.f32.mrf.mxu0
  %v427 = vadd.f32 0.0, %v426
  %428 = vmatmul.bf16.gmra.mxu0 %v251
  %v429 = vpop.f32.mrf.mxu0
  %v430 = vadd.f32 0.0, %v429
  %v431 = vpop.f32.mrf.mxu0
  %v432 = vadd.f32 0.0, %v431
  %433 = vmatmul.bf16.gmra.mxu0 %v253
  %v434 = vpop.f32.mrf.mxu0
  %v435 = vadd.f32 0.0, %v434
  %v436 = vpop.f32.mrf.mxu0
  %v437 = vadd.f32 0.0, %v436
  %438 = vmatmul.bf16.gmra.mxu0 %v255
  %v439 = vpop.f32.mrf.mxu0
  %v440 = vadd.f32 0.0, %v439
  %v441 = vpop.f32.mrf.mxu0
  %v442 = vadd.f32 0.0, %v441
  %443 = vmatmul.bf16.gmra.mxu0 %v257
  %v444 = vpop.f32.mrf.mxu0
  %v445 = vadd.f32 0.0, %v444
  %v446 = vpop.f32.mrf.mxu0
  %v447 = vadd.f32 0.0, %v446
  %448 = vmatmul.bf16.gmra.mxu0 %v259
  %v449 = vpop.f32.mrf.mxu0
  %v450 = vadd.f32 0.0, %v449
  %v451 = vpop.f32.mrf.mxu0
  %v452 = vadd.f32 0.0, %v451
  %453 = vmatmul.bf16.gmra.mxu0 %v261
  %v454 = vpop.f32.mrf.mxu0
  %v455 = vadd.f32 0.0, %v454
  %v456 = vpop.f32.mrf.mxu0
  %v457 = vadd.f32 0.0, %v456
  %458 = vmatmul.bf16.gmra.mxu0 %v263
  %v459 = vpop.f32.mrf.mxu0
  %v460 = vadd.f32 0.0, %v459
  %v461 = vpop.f32.mrf.mxu0
  %v462 = vadd.f32 0.0, %v461
  %463 = vmatmul.bf16.gmra.mxu0 %v265
  %v464 = vpop.f32.mrf.mxu0
  %v465 = vadd.f32 0.0, %v464
  %v466 = vpop.f32.mrf.mxu0
  %v467 = vadd.f32 0.0, %v466
  %468 = vmatmul.bf16.gmra.mxu0 %v267
  %v469 = vpop.f32.mrf.mxu0
  %v470 = vadd.f32 0.0, %v469
  %v471 = vpop.f32.mrf.mxu0
  %v472 = vadd.f32 0.0, %v471
  %473 = vmatmul.bf16.gmra.mxu0 %v269
  %v474 = vpop.f32.mrf.mxu0
  %v475 = vadd.f32 0.0, %v474
  %v476 = vpop.f32.mrf.mxu0
  %v477 = vadd.f32 0.0, %v476
  %478 = vmatmul.bf16.gmra.mxu0 %v271
  %v479 = vpop.f32.mrf.mxu0
  %v480 = vadd.f32 0.0, %v479
  %v481 = vpop.f32.mrf.mxu0
  %v482 = vadd.f32 0.0, %v481
  %483 = vmatmul.bf16.gmra.mxu0 %v273
  %v484 = vpop.f32.mrf.mxu0
  %v485 = vadd.f32 0.0, %v484
  %v486 = vpop.f32.mrf.mxu0
  %v487 = vadd.f32 0.0, %v486
  %488 = vmatmul.bf16.gmra.mxu0 %v275
  %v489 = vpop.f32.mrf.mxu0
  %v490 = vadd.f32 0.0, %v489
  %v491 = vpop.f32.mrf.mxu0
  %v492 = vadd.f32 0.0, %v491
  %493 = vdwg.mxu0
  %494 = vmatpush.bf16.msra.mxu0 %v388
  %495 = vmatpush.bf16.msra.mxu0 %v387
  %496 = vmatpush.bf16.msra.mxu0 %v386
  %497 = vmatpush.bf16.msra.mxu0 %v385
  %498 = vmatpush.bf16.msra.mxu0 %v384
  %499 = vmatpush.bf16.msra.mxu0 %v383
  %500 = vmatpush.bf16.msra.mxu0 %v382
  %501 = vmatpush.bf16.msra.mxu0 %v381
  %502 = vmatmul.bf16.gmra.mxu0 %v246
  %v503 = vpop.f32.mrf.mxu0
  %v504 = vadd.f32 %v415, %v503
  %v505 = vpop.f32.mrf.mxu0
  %v506 = vadd.f32 %v417, %v505
  %507 = vmatmul.bf16.gmra.mxu0 %v248
  %v508 = vpop.f32.mrf.mxu0
  %v509 = vadd.f32 %v420, %v508
  %v510 = vpop.f32.mrf.mxu0
  %v511 = vadd.f32 %v422, %v510
  %512 = vmatmul.bf16.gmra.mxu0 %v250
  %v513 = vpop.f32.mrf.mxu0
  %v514 = vadd.f32 %v425, %v513
  %v515 = vpop.f32.mrf.mxu0
  %v516 = vadd.f32 %v427, %v515
  %517 = vmatmul.bf16.gmra.mxu0 %v252
  %v518 = vpop.f32.mrf.mxu0
  %v519 = vadd.f32 %v430, %v518
  %v520 = vpop.f32.mrf.mxu0
  %v521 = vadd.f32 %v432, %v520
  %522 = vmatmul.bf16.gmra.mxu0 %v254
  %v523 = vpop.f32.mrf.mxu0
  %v524 = vadd.f32 %v435, %v523
  %v525 = vpop.f32.mrf.mxu0
  %v526 = vadd.f32 %v437, %v525
  %527 = vmatmul.bf16.gmra.mxu0 %v256
  %v528 = vpop.f32.mrf.mxu0
  %v529 = vadd.f32 %v440, %v528
  %v530 = vpop.f32.mrf.mxu0
  %v531 = vadd.f32 %v442, %v530
  %532 = vmatmul.bf16.gmra.mxu0 %v258
  %v533 = vpop.f32.mrf.mxu0
  %v534 = vadd.f32 %v445, %v533
  %v535 = vpop.f32.mrf.mxu0
  %v536 = vadd.f32 %v447, %v535
  %537 = vmatmul.bf16.gmra.mxu0 %v260
  %v538 = vpop.f32.mrf.mxu0
  %v539 = vadd.f32 %v450, %v538
  %v540 = vpop.f32.mrf.mxu0
  %v541 = vadd.f32 %v452, %v540
  %542 = vmatmul.bf16.gmra.mxu0 %v262
  %v543 = vpop.f32.mrf.mxu0
  %v544 = vadd.f32 %v455, %v543
  %v545 = vpop.f32.mrf.mxu0
  %v546 = vadd.f32 %v457, %v545
  %547 = vmatmul.bf16.gmra.mxu0 %v264
  %v548 = vpop.f32.mrf.mxu0
  %v549 = vadd.f32 %v460, %v548
  %v550 = vpop.f32.mrf.mxu0
  %v551 = vadd.f32 %v462, %v550
  %552 = vmatmul.bf16.gmra.mxu0 %v266
  %v553 = vpop.f32.mrf.mxu0
  %v554 = vadd.f32 %v465, %v553
  %v555 = vpop.f32.mrf.mxu0
  %v556 = vadd.f32 %v467, %v555
  %557 = vmatmul.bf16.gmra.mxu0 %v268
  %v558 = vpop.f32.mrf.mxu0
  %v559 = vadd.f32 %v470, %v558
  %v560 = vpop.f32.mrf.mxu0
  %v561 = vadd.f32 %v472, %v560
  %562 = vmatmul.bf16.gmra.mxu0 %v270
  %v563 = vpop.f32.mrf.mxu0
  %v564 = vadd.f32 %v475, %v563
  %v565 = vpop.f32.mrf.mxu0
  %v566 = vadd.f32 %v477, %v565
  %567 = vmatmul.bf16.gmra.mxu0 %v272
  %v568 = vpop.f32.mrf.mxu0
  %v569 = vadd.f32 %v480, %v568
  %v570 = vpop.f32.mrf.mxu0
  %v571 = vadd.f32 %v482, %v570
  %572 = vmatmul.bf16.gmra.mxu0 %v274
  %v573 = vpop.f32.mrf.mxu0
  %v574 = vadd.f32 %v485, %v573
  %v575 = vpop.f32.mrf.mxu0
  %v576 = vadd.f32 %v487, %v575
  %577 = vmatmul.bf16.gmra.mxu0 %v276
  %v578 = vpop.f32.mrf.mxu0
  %v579 = vadd.f32 %v490, %v578
  %v580 = vpop.f32.mrf.mxu0
  %v581 = vadd.f32 %v492, %v580
  %582 = vdwg.mxu0
  %v583 = vadd.f32 %v53, %v504
  %v584 = vadd.f32 %v54, %v506
  %v585 = vadd.f32 %v55, %v509
  %v586 = vadd.f32 %v56, %v511
  %v587 = vadd.f32 %v57, %v514
  %v588 = vadd.f32 %v58, %v516
  %v589 = vadd.f32 %v59, %v519
  %v590 = vadd.f32 %v60, %v521
  %v591 = vadd.f32 %v61, %v524
  %v592 = vadd.f32 %v62, %v526
  %v593 = vadd.f32 %v63, %v529
  %v594 = vadd.f32 %v64, %v531
  %v595 = vadd.f32 %v65, %v534
  %v596 = vadd.f32 %v66, %v536
  %v597 = vadd.f32 %v67, %v539
  %v598 = vadd.f32 %v68, %v541
  %v599 = vadd.f32 %v69, %v544
  %v600 = vadd.f32 %v70, %v546
  %v601 = vadd.f32 %v71, %v549
  %v602 = vadd.f32 %v72, %v551
  %v603 = vadd.f32 %v73, %v554
  %v604 = vadd.f32 %v74, %v556
  %v605 = vadd.f32 %v75, %v559
  %v606 = vadd.f32 %v76, %v561
  %v607 = vadd.f32 %v77, %v564
  %v608 = vadd.f32 %v78, %v566
  %v609 = vadd.f32 %v79, %v569
  %v610 = vadd.f32 %v80, %v571
  %v611 = vadd.f32 %v81, %v574
  %v612 = vadd.f32 %v82, %v576
  %v613 = vadd.f32 %v83, %v579
  %v614 = vadd.f32 %v84, %v581
  %615 = vst [vmem:[#allocation2] sm:$0xff] %v583
  %616 = vst [vmem:[#allocation2 + $0x8] sm:$0xff] %v584
  %617 = vst [vmem:[#allocation2 + $0x10] sm:$0xff] %v585
  %618 = vst [vmem:[#allocation2 + $0x18] sm:$0xff] %v586
  %619 = vst [vmem:[#allocation2 + $0x20] sm:$0xff] %v587
  %620 = vst [vmem:[#allocation2 + $0x28] sm:$0xff] %v588
  %621 = vst [vmem:[#allocation2 + $0x30] sm:$0xff] %v589
  %622 = vst [vmem:[#allocation2 + $0x38] sm:$0xff] %v590
  %623 = vst [vmem:[#allocation2 + $0x40] sm:$0xff] %v591
  %624 = vst [vmem:[#allocation2 + $0x48] sm:$0xff] %v592
  %625 = vst [vmem:[#allocation2 + $0x50] sm:$0xff] %v593
  %626 = vst [vmem:[#allocation2 + $0x58] sm:$0xff] %v594
  %627 = vst [vmem:[#allocation2 + $0x60] sm:$0xff] %v595
  %628 = vst [vmem:[#allocation2 + $0x68] sm:$0xff] %v596
  %629 = vst [vmem:[#allocation2 + $0x70] sm:$0xff] %v597
  %630 = vst [vmem:[#allocation2 + $0x78] sm:$0xff] %v598
  %631 = vst [vmem:[#allocation2 + $0x80] sm:$0xff] %v599
  %632 = vst [vmem:[#allocation2 + $0x88] sm:$0xff] %v600
  %633 = vst [vmem:[#allocation2 + $0x90] sm:$0xff] %v601
  %634 = vst [vmem:[#allocation2 + $0x98] sm:$0xff] %v602
  %635 = vst [vmem:[#allocation2 + $0xa0] sm:$0xff] %v603
  %636 = vst [vmem:[#allocation2 + $0xa8] sm:$0xff] %v604
  %637 = vst [vmem:[#allocation2 + $0xb0] sm:$0xff] %v605
  %638 = vst [vmem:[#allocation2 + $0xb8] sm:$0xff] %v606
  %639 = vst [vmem:[#allocation2 + $0xc0] sm:$0xff] %v607
  %640 = vst [vmem:[#allocation2 + $0xc8] sm:$0xff] %v608
  %641 = vst [vmem:[#allocation2 + $0xd0] sm:$0xff] %v609
  %642 = vst [vmem:[#allocation2 + $0xd8] sm:$0xff] %v610
  %643 = vst [vmem:[#allocation2 + $0xe0] sm:$0xff] %v611
  %644 = vst [vmem:[#allocation2 + $0xe8] sm:$0xff] %v612
  %645 = vst [vmem:[#allocation2 + $0xf0] sm:$0xff] %v613
  %646 = vst [vmem:[#allocation2 + $0xf8] sm:$0xff] %v614
  // Predicated region
  $region22: #{gcn_forward.2} parent=0 // pred_check
    %p647 = pneg %p17
  $region23: #{gcn_forward.2} parent=0 // pred_check_branch
    %649 = sbr.rel (%p647) target = $region25
  $region24: #{gcn_forward.2} parent=0 // pred_region
    %v650 = vld [vmem:[#allocation2] sm:$0xff]
    %v651 = vld [vmem:[#allocation2 + $0x8] sm:$0xff]
    %v652 = vld [vmem:[#allocation2 + $0x10] sm:$0xff]
    %v653 = vld [vmem:[#allocation2 + $0x18] sm:$0xff]
    %v654 = vld [vmem:[#allocation2 + $0x20] sm:$0xff]
    %v655 = vld [vmem:[#allocation2 + $0x28] sm:$0xff]
    %v656 = vld [vmem:[#allocation2 + $0x30] sm:$0xff]
    %v657 = vld [vmem:[#allocation2 + $0x38] sm:$0xff]
    %v658 = vld [vmem:[#allocation2 + $0x40] sm:$0xff]
    %v659 = vld [vmem:[#allocation2 + $0x48] sm:$0xff]
    %v660 = vld [vmem:[#allocation2 + $0x50] sm:$0xff]
    %v661 = vld [vmem:[#allocation2 + $0x58] sm:$0xff]
    %v662 = vld [vmem:[#allocation2 + $0x60] sm:$0xff]
    %v663 = vld [vmem:[#allocation2 + $0x68] sm:$0xff]
    %v664 = vld [vmem:[#allocation2 + $0x70] sm:$0xff]
    %v665 = vld [vmem:[#allocation2 + $0x78] sm:$0xff]
    %v666 = vld [vmem:[#allocation2 + $0x80] sm:$0xff]
    %v667 = vld [vmem:[#allocation2 + $0x88] sm:$0xff]
    %v668 = vld [vmem:[#allocation2 + $0x90] sm:$0xff]
    %v669 = vld [vmem:[#allocation2 + $0x98] sm:$0xff]
    %v670 = vld [vmem:[#allocation2 + $0xa0] sm:$0xff]
    %v671 = vld [vmem:[#allocation2 + $0xa8] sm:$0xff]
    %v672 = vld [vmem:[#allocation2 + $0xb0] sm:$0xff]
    %v673 = vld [vmem:[#allocation2 + $0xb8] sm:$0xff]
    %v674 = vld [vmem:[#allocation2 + $0xc0] sm:$0xff]
    %v675 = vld [vmem:[#allocation2 + $0xc8] sm:$0xff]
    %v676 = vld [vmem:[#allocation2 + $0xd0] sm:$0xff]
    %v677 = vld [vmem:[#allocation2 + $0xd8] sm:$0xff]
    %v678 = vld [vmem:[#allocation2 + $0xe0] sm:$0xff]
    %v679 = vld [vmem:[#allocation2 + $0xe8] sm:$0xff]
    %v680 = vld [vmem:[#allocation2 + $0xf0] sm:$0xff]
    %v681 = vld [vmem:[#allocation2 + $0xf8] sm:$0xff]
    %v682 = vpack.c.bf16 %v651, %v650
    %v683 = vpack.c.bf16 %v653, %v652
    %v684 = vpack.c.bf16 %v655, %v654
    %v685 = vpack.c.bf16 %v657, %v656
    %v686 = vpack.c.bf16 %v659, %v658
    %v687 = vpack.c.bf16 %v661, %v660
    %v688 = vpack.c.bf16 %v663, %v662
    %v689 = vpack.c.bf16 %v665, %v664
    %v690 = vpack.c.bf16 %v667, %v666
    %v691 = vpack.c.bf16 %v669, %v668
    %v692 = vpack.c.bf16 %v671, %v670
    %v693 = vpack.c.bf16 %v673, %v672
    %v694 = vpack.c.bf16 %v675, %v674
    %v695 = vpack.c.bf16 %v677, %v676
    %v696 = vpack.c.bf16 %v679, %v678
    %v697 = vpack.c.bf16 %v681, %v680
    %v698 = vld [vmem:[%s2] sm:$0xf]
    %v699 = vld [vmem:[%s2 + $0x4] sm:$0xf]
    %v700 = vld [vmem:[%s2 + $0x8] sm:$0xf]
    %v701 = vld [vmem:[%s2 + $0xc] sm:$0xf]
    %v702 = vld [vmem:[%s2 + $0x10] sm:$0xf]
    %v703 = vld [vmem:[%s2 + $0x14] sm:$0xf]
    %v704 = vld [vmem:[%s2 + $0x18] sm:$0xf]
    %v705 = vld [vmem:[%s2 + $0x1c] sm:$0xf]
    %v706 = vld [vmem:[%s2 + $0x20] sm:$0xf]
    %v707 = vld [vmem:[%s2 + $0x24] sm:$0xf]
    %v708 = vld [vmem:[%s2 + $0x28] sm:$0xf]
    %v709 = vld [vmem:[%s2 + $0x2c] sm:$0xf]
    %v710 = vld [vmem:[%s2 + $0x30] sm:$0xf]
    %v711 = vld [vmem:[%s2 + $0x34] sm:$0xf]
    %v712 = vld [vmem:[%s2 + $0x38] sm:$0xf]
    %v713 = vld [vmem:[%s2 + $0x3c] sm:$0xf]
    %v714 = vld [vmem:[%s3] sm:$0x1]
    %v716 = vperm.slane %v714, 0
    %v734 = vunpack.c.l.b16 %v698
    %v735 = vunpack.c.l.b16 %v699
    %v736 = vunpack.c.l.b16 %v700
    %v737 = vunpack.c.l.b16 %v701
    %v738 = vunpack.c.l.b16 %v702
    %v739 = vunpack.c.l.b16 %v703
    %v740 = vunpack.c.l.b16 %v704
    %v741 = vunpack.c.l.b16 %v705
    %v742 = vunpack.c.l.b16 %v706
    %v743 = vunpack.c.l.b16 %v707
    %v744 = vunpack.c.l.b16 %v708
    %v745 = vunpack.c.l.b16 %v709
    %v746 = vunpack.c.l.b16 %v710
    %v747 = vunpack.c.l.b16 %v711
    %v748 = vunpack.c.l.b16 %v712
    %v749 = vunpack.c.l.b16 %v713
    %v750 = vpack.c.b16 %v735, %v734
    %v751 = vpack.c.b16 %v737, %v736
    %v752 = vpack.c.b16 %v739, %v738
    %v753 = vpack.c.b16 %v741, %v740
    %v754 = vpack.c.b16 %v743, %v742
    %v755 = vpack.c.b16 %v745, %v744
    %v756 = vpack.c.b16 %v747, %v746
    %v757 = vpack.c.b16 %v749, %v748
    %766 = vmatpush.bf16.msra.mxu0 %v757
    %767 = vmatpush.bf16.msra.mxu0 %v756
    %768 = vmatpush.bf16.msra.mxu0 %v755
    %769 = vmatpush.bf16.msra.mxu0 %v754
    %770 = vmatpush.bf16.msra.mxu0 %v753
    %771 = vmatpush.bf16.msra.mxu0 %v752
    %772 = vmatpush.bf16.msra.mxu0 %v751
    %773 = vmatpush.bf16.msra.mxu0 %v750
    %774 = vmatmul.bf16.gmra.mxu0 %v682
    %v775 = vpop.f32.mrf.mxu0
    %v776 = vadd.f32 %v716, %v775
    %v777 = vpop.f32.mrf.mxu0
    %v778 = vadd.f32 %v716, %v777
    %779 = vmatmul.bf16.gmra.mxu0 %v683
    %v780 = vpop.f32.mrf.mxu0
    %v781 = vadd.f32 %v716, %v780
    %v782 = vpop.f32.mrf.mxu0
    %v783 = vadd.f32 %v716, %v782
    %784 = vmatmul.bf16.gmra.mxu0 %v684
    %v785 = vpop.f32.mrf.mxu0
    %v786 = vadd.f32 %v716, %v785
    %v787 = vpop.f32.mrf.mxu0
    %v788 = vadd.f32 %v716, %v787
    %789 = vmatmul.bf16.gmra.mxu0 %v685
    %v790 = vpop.f32.mrf.mxu0
    %v791 = vadd.f32 %v716, %v790
    %v792 = vpop.f32.mrf.mxu0
    %v793 = vadd.f32 %v716, %v792
    %794 = vmatmul.bf16.gmra.mxu0 %v686
    %v795 = vpop.f32.mrf.mxu0
    %v796 = vadd.f32 %v716, %v795
    %v797 = vpop.f32.mrf.mxu0
    %v798 = vadd.f32 %v716, %v797
    %799 = vmatmul.bf16.gmra.mxu0 %v687
    %v800 = vpop.f32.mrf.mxu0
    %v801 = vadd.f32 %v716, %v800
    %v802 = vpop.f32.mrf.mxu0
    %v803 = vadd.f32 %v716, %v802
    %804 = vmatmul.bf16.gmra.mxu0 %v688
    %v805 = vpop.f32.mrf.mxu0
    %v806 = vadd.f32 %v716, %v805
    %v807 = vpop.f32.mrf.mxu0
    %v808 = vadd.f32 %v716, %v807
    %809 = vmatmul.bf16.gmra.mxu0 %v689
    %v810 = vpop.f32.mrf.mxu0
    %v811 = vadd.f32 %v716, %v810
    %v812 = vpop.f32.mrf.mxu0
    %v813 = vadd.f32 %v716, %v812
    %814 = vmatmul.bf16.gmra.mxu0 %v690
    %v815 = vpop.f32.mrf.mxu0
    %v816 = vadd.f32 %v716, %v815
    %v817 = vpop.f32.mrf.mxu0
    %v818 = vadd.f32 %v716, %v817
    %819 = vmatmul.bf16.gmra.mxu0 %v691
    %v820 = vpop.f32.mrf.mxu0
    %v821 = vadd.f32 %v716, %v820
    %v822 = vpop.f32.mrf.mxu0
    %v823 = vadd.f32 %v716, %v822
    %824 = vmatmul.bf16.gmra.mxu0 %v692
    %v825 = vpop.f32.mrf.mxu0
    %v826 = vadd.f32 %v716, %v825
    %v827 = vpop.f32.mrf.mxu0
    %v828 = vadd.f32 %v716, %v827
    %829 = vmatmul.bf16.gmra.mxu0 %v693
    %v830 = vpop.f32.mrf.mxu0
    %v831 = vadd.f32 %v716, %v830
    %v832 = vpop.f32.mrf.mxu0
    %v833 = vadd.f32 %v716, %v832
    %834 = vmatmul.bf16.gmra.mxu0 %v694
    %v835 = vpop.f32.mrf.mxu0
    %v836 = vadd.f32 %v716, %v835
    %v837 = vpop.f32.mrf.mxu0
    %v838 = vadd.f32 %v716, %v837
    %839 = vmatmul.bf16.gmra.mxu0 %v695
    %v840 = vpop.f32.mrf.mxu0
    %v841 = vadd.f32 %v716, %v840
    %v842 = vpop.f32.mrf.mxu0
    %v843 = vadd.f32 %v716, %v842
    %844 = vmatmul.bf16.gmra.mxu0 %v696
    %v845 = vpop.f32.mrf.mxu0
    %v846 = vadd.f32 %v716, %v845
    %v847 = vpop.f32.mrf.mxu0
    %v848 = vadd.f32 %v716, %v847
    %849 = vmatmul.bf16.gmra.mxu0 %v697
    %v850 = vpop.f32.mrf.mxu0
    %v851 = vadd.f32 %v716, %v850
    %v852 = vpop.f32.mrf.mxu0
    %v853 = vadd.f32 %v716, %v852
    %854 = vdwg.mxu0
    %v855 = vmax.f32 %v776, 0.0
    %v856 = vmax.f32 %v778, 0.0
    %v857 = vmax.f32 %v781, 0.0
    %v858 = vmax.f32 %v783, 0.0
    %v859 = vmax.f32 %v786, 0.0
    %v860 = vmax.f32 %v788, 0.0
    %v861 = vmax.f32 %v791, 0.0
    %v862 = vmax.f32 %v793, 0.0
    %v863 = vmax.f32 %v796, 0.0
    %v864 = vmax.f32 %v798, 0.0
    %v865 = vmax.f32 %v801, 0.0
    %v866 = vmax.f32 %v803, 0.0
    %v867 = vmax.f32 %v806, 0.0
    %v868 = vmax.f32 %v808, 0.0
    %v869 = vmax.f32 %v811, 0.0
    %v870 = vmax.f32 %v813, 0.0
    %v871 = vmax.f32 %v816, 0.0
    %v872 = vmax.f32 %v818, 0.0
    %v873 = vmax.f32 %v821, 0.0
    %v874 = vmax.f32 %v823, 0.0
    %v875 = vmax.f32 %v826, 0.0
    %v876 = vmax.f32 %v828, 0.0
    %v877 = vmax.f32 %v831, 0.0
    %v878 = vmax.f32 %v833, 0.0
    %v879 = vmax.f32 %v836, 0.0
    %v880 = vmax.f32 %v838, 0.0
    %v881 = vmax.f32 %v841, 0.0
    %v882 = vmax.f32 %v843, 0.0
    %v883 = vmax.f32 %v846, 0.0
    %v884 = vmax.f32 %v848, 0.0
    %v885 = vmax.f32 %v851, 0.0
    %v886 = vmax.f32 %v853, 0.0
    %887 = vst [vmem:[%s4] sm:$0xff] %v855
    %888 = vst [vmem:[%s4 + $0x8] sm:$0xff] %v856
    %889 = vst [vmem:[%s4 + $0x10] sm:$0xff] %v857
    %890 = vst [vmem:[%s4 + $0x18] sm:$0xff] %v858
    %891 = vst [vmem:[%s4 + $0x20] sm:$0xff] %v859
    %892 = vst [vmem:[%s4 + $0x28] sm:$0xff] %v860
    %893 = vst [vmem:[%s4 + $0x30] sm:$0xff] %v861
    %894 = vst [vmem:[%s4 + $0x38] sm:$0xff] %v862
    %895 = vst [vmem:[%s4 + $0x40] sm:$0xff] %v863
    %896 = vst [vmem:[%s4 + $0x48] sm:$0xff] %v864
    %897 = vst [vmem:[%s4 + $0x50] sm:$0xff] %v865
    %898 = vst [vmem:[%s4 + $0x58] sm:$0xff] %v866
    %899 = vst [vmem:[%s4 + $0x60] sm:$0xff] %v867
    %900 = vst [vmem:[%s4 + $0x68] sm:$0xff] %v868
    %901 = vst [vmem:[%s4 + $0x70] sm:$0xff] %v869
    %902 = vst [vmem:[%s4 + $0x78] sm:$0xff] %v870
    %903 = vst [vmem:[%s4 + $0x80] sm:$0xff] %v871
    %904 = vst [vmem:[%s4 + $0x88] sm:$0xff] %v872
    %905 = vst [vmem:[%s4 + $0x90] sm:$0xff] %v873
    %906 = vst [vmem:[%s4 + $0x98] sm:$0xff] %v874
    %907 = vst [vmem:[%s4 + $0xa0] sm:$0xff] %v875
    %908 = vst [vmem:[%s4 + $0xa8] sm:$0xff] %v876
    %909 = vst [vmem:[%s4 + $0xb0] sm:$0xff] %v877
    %910 = vst [vmem:[%s4 + $0xb8] sm:$0xff] %v878
    %911 = vst [vmem:[%s4 + $0xc0] sm:$0xff] %v879
    %912 = vst [vmem:[%s4 + $0xc8] sm:$0xff] %v880
    %913 = vst [vmem:[%s4 + $0xd0] sm:$0xff] %v881
    %914 = vst [vmem:[%s4 + $0xd8] sm:$0xff] %v882
    %915 = vst [vmem:[%s4 + $0xe0] sm:$0xff] %v883
    %916 = vst [vmem:[%s4 + $0xe8] sm:$0xff] %v884
    %917 = vst [vmem:[%s4 + $0xf0] sm:$0xff] %v885
    %918 = vst [vmem:[%s4 + $0xf8] sm:$0xff] %v886
  $region25: #{gcn_forward.2} parent=0 // pred_fallthru
    _
  // Predicated region
  $region26: #{gcn_forward.2} parent=0 // pred_check
    _
  $region27: #{gcn_forward.2} parent=0 // pred_check_branch
    %920 = sbr.rel (0) target = $region29
  $region28: #{gcn_forward.2} parent=0 // pred_region
    _
  $region29: #{gcn_forward.2} parent=0 // pred_fallthru
    _
  // Predicated region
  $region30: #{gcn_forward.2} parent=0 // pred_check
    _
  $region31: #{gcn_forward.2} parent=0 // pred_check_branch
    %922 = sbr.rel (0) target = $region33
  $region32: #{gcn_forward.2} parent=0 // pred_region
    _
  $region33: #{gcn_forward.2} parent=0 // pred_fallthru
    _

</llo_original>
